<compile_context>
chip_gen: v5e
topology: v5e:2x2
jax: 0.10.0
libtpu: 0.0.40
codegen_flags: <defaults>
</compile_context>

<pallas_src>
import functools

import jax
import jax.numpy as jnp
from jax.experimental import pallas as pl
from jax.experimental.pallas import tpu as pltpu


def _leaky(x):
    # LeakyReLU(negative_slope=0.2), matches torch.nn.LeakyReLU(0.2)
    return jnp.where(x > 0, x, 0.2 * x)


def _round_up(x, m):
    return ((x + m - 1) // m) * m


# ----------------------------------------------------------------------------
# Fused kernel: rel_proj1 + ReLU + num_layer x (InGramRelationLayer + ReLU
# [+ residual proj + ReLU + add]).
# ----------------------------------------------------------------------------
def _encoder_rel_fused_kernel(ht_col_ref, head_row_ref, bin_col_ref,
                              x0_ref, wp_ref, bp_ref, hexp_ref, hexp_t_ref,
                              wah_ref, wag_ref, bzv_ref, avec_ref, abin_ref,
                              wr_ref, br_ref,
                              o_ref, *, num_layer, num_head, use_res):
    f32 = jnp.float32
    NEG = jnp.float32(-1e30)        # finite "minus infinity" (0 * NEG stays finite)

    T2p = ht_col_ref.shape[0]
    Tp = T2p // 2
    Rp, Dp = o_ref.shape
    Hp = hexp_ref.shape[0]
    Bp = abin_ref.shape[0]

    ht_col = ht_col_ref[...]         # (2Tp, 1) int32 [head; tail], padded rows = -1
    head_row = head_row_ref[...]     # (1, Tp)  int32
    bin_col = bin_col_ref[...]       # (Tp, 1)  int32

    # ---- one-hot / mask matrices, built once (loop-invariant across layers) ----
    # Padded triplets (index -1) give all-zero rows/columns -> contribute nothing.
    ht_oh = (jax.lax.broadcasted_iota(jnp.int32, (T2p, Rp), 1)
             == ht_col).astype(f32)                                  # (2Tp, Rp) stacked gather
    hoh = ht_oh[:Tp]                                                 # (Tp, Rp) head gather
    hoh_mask = hoh != 0.0                                            # bool mask for seg-max
    hoh_t = (jax.lax.broadcasted_iota(jnp.int32, (Rp, Tp), 0)
             == head_row).astype(f32)                                # (Rp, Tp) scatter
    boh = (jax.lax.broadcasted_iota(jnp.int32, (Tp, Bp), 1)
           == bin_col).astype(f32)                                   # (Tp, Bp) bin gather
    hvalid = jax.lax.broadcasted_iota(jnp.int32, (1, Hp), 1) < num_head   # (1, Hp)

    hexp = hexp_ref[...]             # (Hp, Dp) head -> feature-block expansion
    hexp_t = hexp_t_ref[...]         # (Dp, Hp) feature-block -> head reduction

    # per-bin attention term for ALL layers at once (loop-invariant -> hoisted):
    # leaky(onehot(bins) @ [attn_bin_layer0 | attn_bin_layer1 | ...])
    bin_act_all = _leaky(jnp.dot(boh, abin_ref[...],
                                 preferred_element_type=f32))        # (Tp, L*Hp)

    # emb_rel = relu(rel_emb @ W_proj1 + b_proj1)
    emb = jnp.maximum(
        jnp.dot(x0_ref[...], wp_ref[...], preferred_element_type=f32) + bp_ref[...],
        0.0)                                                         # (Rp, Dp)

    for l in range(num_layer):       # static, small
        # gather emb_rel[head] and emb_rel[tail] in ONE stacked matmul (MXU)
        gathered = jnp.dot(ht_oh, emb, preferred_element_type=f32)   # (2Tp, Dp)
        emb_h = gathered[:Tp]
        emb_t = gathered[Tp:]

        # fused tail-side projection: emb_t @ [wa_t | wg] + [ba | bg]
        proj_t = (jnp.dot(emb_t, wag_ref[l], preferred_element_type=f32)
                  + bzv_ref[l])                                      # (Tp, 2Dp)
        z = jnp.dot(emb_h, wah_ref[l], preferred_element_type=f32) + proj_t[:, :Dp]
        v = proj_t[:, Dp:]                                           # aggr_proj(emb_rel[tail])

        # per-head raw attention scores for ALL heads in one MXU matmul
        za = _leaky(z) * avec_ref[l]                                 # (Tp, Dp)
        raw = (jnp.dot(za, hexp_t, preferred_element_type=f32)
               + bin_act_all[:, l * Hp:(l + 1) * Hp])                # (Tp, Hp)

        # Segment softmax.  Softmax is invariant to any per-segment shift, so
        # the stabiliser is the per-segment max across ALL heads -> fully
        # vectorised (no per-head loop), identical result in exact arithmetic.
        raw_m = jnp.max(jnp.where(hvalid, raw, NEG), axis=1, keepdims=True)     # (Tp, 1)
        seg_m = jnp.max(jnp.where(hoh_mask, raw_m, NEG), axis=0, keepdims=True)  # (1, Rp)
        c = jnp.sum(hoh * seg_m, axis=1, keepdims=True)              # (Tp, 1) gather-back

        av = jnp.where(hvalid, jnp.exp(raw - c), 0.0)                # (Tp, Hp)
        sums = jnp.dot(hoh_t, av, preferred_element_type=f32)        # (Rp, Hp) segment sums
        sums_g = jnp.dot(hoh, sums, preferred_element_type=f32)      # (Tp, Hp) gather-back
        beta = av / (sums_g + jnp.float32(1e-16))                    # (Tp, Hp)

        # weight aggr_proj(emb_rel[tail]) by beta (expanded to feature blocks),
        # then scatter-add over head relations (MXU)
        contrib = jnp.dot(beta, hexp, preferred_element_type=f32) * v    # (Tp, Dp)
        out = jnp.dot(hoh_t, contrib, preferred_element_type=f32)        # (Rp, Dp)

        h_out = jnp.maximum(out, 0.0)                                # encoder ReLU
        if use_res:
            res = jnp.maximum(
                jnp.dot(emb, wr_ref[l], preferred_element_type=f32) + br_ref[l],
                0.0)
            emb = h_out + res
        else:
            emb = h_out

    o_ref[...] = emb


# ----------------------------------------------------------------------------
# Encoder_Rel forward (Pallas wrapper)
# ----------------------------------------------------------------------------
def encoder_rel_forward(params, triplets, *, num_head, num_bin, res_rel):
    f32 = jnp.float32
    rel_emb = params["rel_emb"]
    w1, b1 = params["w_proj1"], params["b_proj1"]
    R, Ein = rel_emb.shape
    D = w1.shape[1]
    L = len(params["layers"])
    T = triplets.shape[0]
    dh = D // num_head

    # lane-dense padding (last dims -> multiples of 128, triplet axis -> x8)
    Rp = _round_up(R, 128)
    Dp = _round_up(D, 128)
    Ep = _round_up(Ein, 128)
    Hp = _round_up(num_head, 128)
    Bp = _round_up(num_bin, 128)
    Tp = _round_up(T, 8)

    def pad2(a, r, c):
        a = jnp.asarray(a, f32)
        return jnp.zeros((r, c), f32).at[:a.shape[0], :a.shape[1]].set(a)

    x0 = pad2(rel_emb, Rp, Ep)
    wp = pad2(w1, Ep, Dp)
    bp = pad2(b1.reshape(1, -1), 1, Dp)

    # head -> feature-block indicator (H, D), padded, and its transpose
    hexp = jnp.repeat(jnp.eye(num_head, dtype=f32), dh, axis=1)
    hexp_p = pad2(hexp, Hp, Dp)
    hexp_t_p = pad2(hexp.T, Dp, Hp)

    layers = params["layers"]
    wah = jnp.stack([pad2(lp["wa"][:D], Dp, Dp) for lp in layers])                 # (L, Dp, Dp)
    wag = jnp.stack([jnp.concatenate([pad2(lp["wa"][D:], Dp, Dp),
                                      pad2(lp["wg"], Dp, Dp)], axis=1)
                     for lp in layers])                                            # (L, Dp, 2Dp)
    bzv = jnp.stack([jnp.concatenate([pad2(lp["ba"].reshape(1, -1), 1, Dp),
                                      pad2(lp["bg"].reshape(1, -1), 1, Dp)], axis=1)
                     for lp in layers])                                            # (L, 1, 2Dp)
    avec = jnp.stack([pad2(lp["attn_vec"].reshape(1, -1), 1, Dp) for lp in layers])  # (L, 1, Dp)
    abin_cat = jnp.concatenate([pad2(lp["attn_bin"], Bp, Hp) for lp in layers],
                               axis=1)                                             # (Bp, L*Hp)
    if res_rel:
        wr = jnp.stack([pad2(lp["wr"], Dp, Dp) for lp in layers])
        br = jnp.stack([pad2(lp["br"].reshape(1, -1), 1, Dp) for lp in layers])
    else:
        wr = jnp.zeros((L, Dp, Dp), f32)
        br = jnp.zeros((L, 1, Dp), f32)

    # triplet indices, padded with -1 (never matches iota -> zero one-hot rows)
    def pad_idx(v):
        return jnp.full((Tp,), -1, jnp.int32).at[:T].set(v.astype(jnp.int32))

    head = pad_idx(triplets[:, 0])
    tail = pad_idx(triplets[:, 1])
    bins = pad_idx(triplets[:, 2])
    ht_col = jnp.concatenate([head, tail]).reshape(2 * Tp, 1)
    head_row = head.reshape(1, Tp)
    bin_col = bins.reshape(Tp, 1)

    kernel = functools.partial(_encoder_rel_fused_kernel,
                               num_layer=L, num_head=num_head,
                               use_res=bool(res_rel))
    vspec = pl.BlockSpec(memory_space=pltpu.MemorySpace.VMEM)
    # NOTE: for very large num_triplets, add a grid over T tiles with
    # scalar-prefetched index arrays and per-tile (R, D) partial accumulators
    # (also lets v7x shard tiles across its two TensorCores). Unnecessary here.
    out = pl.pallas_call(
        kernel,
        out_shape=jax.ShapeDtypeStruct((Rp, Dp), f32),
        in_specs=[vspec] * 15,
        out_specs=vspec,
    )(ht_col, head_row, bin_col,
      x0, wp, bp, hexp_p, hexp_t_p,
      wah, wag, bzv, avec, abin_cat, wr, br)
    return out[:R, :D]


# ----------------------------------------------------------------------------
# Pure-JAX reference for validation (mirrors the PyTorch module exactly)
# ----------------------------------------------------------------------------
def encoder_rel_reference(params, triplets, *, num_head, res_rel):
    emb = jnp.maximum(params["rel_emb"] @ params["w_proj1"] + params["b_proj1"], 0.0)
    R, D = emb.shape
    dh = D // num_head
    head = triplets[:, 0]
    tail = triplets[:, 1]
    bins = triplets[:, 2]
    for lp in params["layers"]:
        cat = jnp.concatenate([emb[head], emb[tail]], axis=-1)
        z = _leaky(cat @ lp["wa"] + lp["ba"]).reshape(-1, num_head, dh)
        avec = lp["attn_vec"].reshape(1, num_head, dh)
        raw = (z * avec).sum(-1) + _leaky(lp["attn_bin"][bins])        # (T, H)
        m = jax.ops.segment_max(raw, head, num_segments=R)
        av = jnp.exp(raw - m[head])
        sums = jax.ops.segment_sum(av, head, num_segments=R)
        beta = av / (sums[head] + 1e-16)
        v = (emb[tail] @ lp["wg"] + lp["bg"]).reshape(-1, num_head, dh)
        contrib = (beta[..., None] * v).reshape(-1, D)
        out = jax.ops.segment_sum(contrib, head, num_segments=R)
        h = jnp.maximum(out, 0.0)
        if res_rel:
            emb = h + jnp.maximum(emb @ lp["wr"] + lp["br"], 0.0)
        else:
            emb = h
    return emb


# ----------------------------------------------------------------------------
# Deterministic synthetic parameter construction (mimics xavier_normal init)
# ----------------------------------------------------------------------------
def _xavier(key, shape, fan_in, fan_out, gain=jnp.sqrt(2.0)):
    std = gain * (2.0 / (fan_in + fan_out)) ** 0.5
    return std * jax.random.normal(key, shape, dtype=jnp.float32)


def make_params(key, *, num_rel, rel_emb_dim, hid_dim, num_bin, num_head,
                num_layer, res_rel):
    keys = jax.random.split(key, 2 + 4 * num_layer)
    params = {
        "rel_emb": _xavier(keys[0], (num_rel, rel_emb_dim), rel_emb_dim, num_rel),
        "w_proj1": _xavier(keys[1], (rel_emb_dim, hid_dim), rel_emb_dim, hid_dim),
        "b_proj1": jnp.zeros((hid_dim,), jnp.float32),
        "layers": [],
    }
    for l in range(num_layer):
        k0, k1, k2, k3 = keys[2 + 4 * l: 6 + 4 * l]
        dh = hid_dim // num_head
        lp = {
            "wa": _xavier(k0, (2 * hid_dim, hid_dim), 2 * hid_dim, hid_dim),
            "ba": jnp.zeros((hid_dim,), jnp.float32),
            "attn_vec": _xavier(k1, (hid_dim,), dh, num_head),
            "attn_bin": _xavier(k2, (num_bin, num_head), num_head, num_bin),
            "wg": _xavier(k3, (hid_dim, hid_dim), hid_dim, hid_dim),
            "bg": jnp.zeros((hid_dim,), jnp.float32),
        }
        if res_rel:
            kr = jax.random.fold_in(k3, 1234)
            lp["wr"] = _xavier(kr, (hid_dim, hid_dim), hid_dim, hid_dim)
            lp["br"] = jnp.zeros((hid_dim,), jnp.float32)
        params["layers"].append(lp)
    return params


if __name__ == "__main__":
    # small config consistent with Encoder_Rel's args
    AUG_NUM_RELS = 12      # args.aug_num_rels
    REL_EMB_DIM = 16       # args.rel_emb_dim
    HID_DIM_REL = 32       # args.hid_dim_rel
    NUM_HEAD = 4           # args.num_head
    NUM_BIN = 6            # args.num_bin
    NUM_LAYER_REL = 2      # args.num_layer_rel
    RES_REL = True         # args.res_rel
    NUM_TRIPLETS = 20

    key = jax.random.PRNGKey(0)
    kp, kh, kt, kb = jax.random.split(key, 4)
    params = make_params(kp, num_rel=AUG_NUM_RELS, rel_emb_dim=REL_EMB_DIM,
                         hid_dim=HID_DIM_REL, num_bin=NUM_BIN,
                         num_head=NUM_HEAD, num_layer=NUM_LAYER_REL,
                         res_rel=RES_REL)

    heads = jax.random.randint(kh, (NUM_TRIPLETS, 1), 0, AUG_NUM_RELS)
    tails = jax.random.randint(kt, (NUM_TRIPLETS, 1), 0, AUG_NUM_RELS)
    bins = jax.random.randint(kb, (NUM_TRIPLETS, 1), 0, NUM_BIN)
    relation_triplets = jnp.concatenate([heads, tails, bins], axis=1).astype(jnp.int32)

    out = encoder_rel_forward(params, relation_triplets,
                              num_head=NUM_HEAD, num_bin=NUM_BIN, res_rel=RES_REL)
    out = jax.block_until_ready(out)

    ref = encoder_rel_reference(params, relation_triplets,
                                num_head=NUM_HEAD, res_rel=RES_REL)
    ref = jax.block_until_ready(ref)

    assert out.shape == (AUG_NUM_RELS, HID_DIM_REL)
    assert jnp.allclose(out, ref, rtol=1e-3, atol=1e-3), (
        f"max abs diff = {float(jnp.max(jnp.abs(out - ref)))}")

    print("KERNEL_OK")
</pallas_src>

<mosaic_0001>
module attributes {stable_mosaic.version = 11 : i64} {
  func.func @_encoder_rel_fused_kernel(%arg0: memref<48x1xi32, #tpu.memory_space<vmem>>, %arg1: memref<1x24xi32, #tpu.memory_space<vmem>>, %arg2: memref<24x1xi32, #tpu.memory_space<vmem>>, %arg3: memref<128x128xf32, #tpu.memory_space<vmem>>, %arg4: memref<128x128xf32, #tpu.memory_space<vmem>>, %arg5: memref<1x128xf32, #tpu.memory_space<vmem>>, %arg6: memref<128x128xf32, #tpu.memory_space<vmem>>, %arg7: memref<128x128xf32, #tpu.memory_space<vmem>>, %arg8: memref<2x128x128xf32, #tpu.memory_space<vmem>>, %arg9: memref<2x128x256xf32, #tpu.memory_space<vmem>>, %arg10: memref<2x1x256xf32, #tpu.memory_space<vmem>>, %arg11: memref<2x1x128xf32, #tpu.memory_space<vmem>>, %arg12: memref<128x256xf32, #tpu.memory_space<vmem>>, %arg13: memref<2x128x128xf32, #tpu.memory_space<vmem>>, %arg14: memref<2x1x128xf32, #tpu.memory_space<vmem>>, %arg15: memref<128x128xf32, #tpu.memory_space<vmem>>) attributes {dimension_semantics = [], scalar_prefetch = 0 : i64, scratch_operands = 0 : i64, tpu.core_type = #tpu.core_type<tc>} {
    %c0 = arith.constant 0 : index
    %c0_0 = arith.constant 0 : index
    %0 = vector.load %arg0[%c0, %c0_0] : memref<48x1xi32, #tpu.memory_space<vmem>>, vector<48x1xi32>
    %c0_1 = arith.constant 0 : index
    %c0_2 = arith.constant 0 : index
    %1 = vector.load %arg1[%c0_1, %c0_2] : memref<1x24xi32, #tpu.memory_space<vmem>>, vector<1x24xi32>
    %c0_3 = arith.constant 0 : index
    %c0_4 = arith.constant 0 : index
    %2 = vector.load %arg2[%c0_3, %c0_4] : memref<24x1xi32, #tpu.memory_space<vmem>>, vector<24x1xi32>
    %3 = tpu.iota {dimensions = array<i32: 1>} : vector<48x128xi32>
    %4 = vector.broadcast %0 : vector<48x1xi32> to vector<48x128xi32>
    %5 = arith.cmpi eq, %3, %4 : vector<48x128xi32>
    %6 = arith.extui %5 : vector<48x128xi1> to vector<48x128xi32>
    %7 = arith.sitofp %6 : vector<48x128xi32> to vector<48x128xf32>
    %8 = vector.extract_strided_slice %7 {offsets = [0, 0], sizes = [24, 128], strides = [1, 1]} : vector<48x128xf32> to vector<24x128xf32>
    %cst = arith.constant 0.000000e+00 : f32
    %9 = vector.broadcast %cst : f32 to vector<24x128xf32>
    %10 = arith.cmpf one, %8, %9 : vector<24x128xf32>
    %11 = tpu.iota {dimensions = array<i32: 0>} : vector<128x24xi32>
    %12 = vector.broadcast %1 : vector<1x24xi32> to vector<128x24xi32>
    %13 = arith.cmpi eq, %11, %12 : vector<128x24xi32>
    %14 = arith.extui %13 : vector<128x24xi1> to vector<128x24xi32>
    %15 = arith.sitofp %14 : vector<128x24xi32> to vector<128x24xf32>
    %16 = tpu.iota {dimensions = array<i32: 1>} : vector<24x128xi32>
    %17 = vector.broadcast %2 : vector<24x1xi32> to vector<24x128xi32>
    %18 = arith.cmpi eq, %16, %17 : vector<24x128xi32>
    %19 = arith.extui %18 : vector<24x128xi1> to vector<24x128xi32>
    %20 = arith.sitofp %19 : vector<24x128xi32> to vector<24x128xf32>
    %21 = tpu.iota {dimensions = array<i32: 1>} : vector<1x128xi32>
    %c4_i32 = arith.constant 4 : i32
    %22 = vector.broadcast %c4_i32 : i32 to vector<1x128xi32>
    %23 = arith.cmpi slt, %21, %22 : vector<1x128xi32>
    %c0_5 = arith.constant 0 : index
    %c0_6 = arith.constant 0 : index
    %24 = vector.load %arg6[%c0_5, %c0_6] : memref<128x128xf32, #tpu.memory_space<vmem>>, vector<128x128xf32>
    %c0_7 = arith.constant 0 : index
    %c0_8 = arith.constant 0 : index
    %25 = vector.load %arg7[%c0_7, %c0_8] : memref<128x128xf32, #tpu.memory_space<vmem>>, vector<128x128xf32>
    %c0_9 = arith.constant 0 : index
    %c0_10 = arith.constant 0 : index
    %26 = vector.load %arg12[%c0_9, %c0_10] : memref<128x256xf32, #tpu.memory_space<vmem>>, vector<128x256xf32>
    %cst_11 = arith.constant dense<0.000000e+00> : vector<24x256xf32>
    %27 = tpu.matmul %20, %26, %cst_11 {dimension_numbers = #tpu.dot_dimension_numbers<[1], [0], [0], [1], [0, 0, 1, 1], [], []>} : vector<24x128xf32>, vector<128x256xf32>, vector<24x256xf32> -> vector<24x256xf32>
    %cst_12 = arith.constant 0.000000e+00 : f32
    %28 = vector.broadcast %cst_12 : f32 to vector<24x256xf32>
    %29 = arith.cmpf ogt, %27, %28 : vector<24x256xf32>
    %cst_13 = arith.constant 2.000000e-01 : f32
    %30 = vector.broadcast %cst_13 : f32 to vector<24x256xf32>
    %31 = arith.mulf %30, %27 : vector<24x256xf32>
    %32 = arith.select %29, %27, %31 : vector<24x256xi1>, vector<24x256xf32>
    %c0_14 = arith.constant 0 : index
    %c0_15 = arith.constant 0 : index
    %33 = vector.load %arg3[%c0_14, %c0_15] : memref<128x128xf32, #tpu.memory_space<vmem>>, vector<128x128xf32>
    %c0_16 = arith.constant 0 : index
    %c0_17 = arith.constant 0 : index
    %34 = vector.load %arg4[%c0_16, %c0_17] : memref<128x128xf32, #tpu.memory_space<vmem>>, vector<128x128xf32>
    %cst_18 = arith.constant dense<0.000000e+00> : vector<128x128xf32>
    %35 = tpu.matmul %33, %34, %cst_18 {dimension_numbers = #tpu.dot_dimension_numbers<[1], [0], [0], [1], [0, 0, 1, 1], [], []>} : vector<128x128xf32>, vector<128x128xf32>, vector<128x128xf32> -> vector<128x128xf32>
    %c0_19 = arith.constant 0 : index
    %c0_20 = arith.constant 0 : index
    %36 = vector.load %arg5[%c0_19, %c0_20] : memref<1x128xf32, #tpu.memory_space<vmem>>, vector<1x128xf32>
    %37 = vector.broadcast %36 : vector<1x128xf32> to vector<128x128xf32>
    %38 = arith.addf %35, %37 : vector<128x128xf32>
    %cst_21 = arith.constant 0.000000e+00 : f32
    %39 = vector.broadcast %cst_21 : f32 to vector<128x128xf32>
    %40 = arith.maximumf %38, %39 : vector<128x128xf32>
    %cst_22 = arith.constant dense<0.000000e+00> : vector<48x128xf32>
    %41 = tpu.matmul %7, %40, %cst_22 {dimension_numbers = #tpu.dot_dimension_numbers<[1], [0], [0], [1], [0, 0, 1, 1], [], []>} : vector<48x128xf32>, vector<128x128xf32>, vector<48x128xf32> -> vector<48x128xf32>
    %42 = vector.extract_strided_slice %41 {offsets = [0, 0], sizes = [24, 128], strides = [1, 1]} : vector<48x128xf32> to vector<24x128xf32>
    %43 = vector.extract_strided_slice %41 {offsets = [24, 0], sizes = [24, 128], strides = [1, 1]} : vector<48x128xf32> to vector<24x128xf32>
    %c0_23 = arith.constant 0 : index
    %c0_24 = arith.constant 0 : index
    %c0_25 = arith.constant 0 : index
    %44 = vector.load %arg9[%c0_23, %c0_24, %c0_25] : memref<2x128x256xf32, #tpu.memory_space<vmem>>, vector<1x128x256xf32>
    %45 = vector.shape_cast %44 : vector<1x128x256xf32> to vector<128x256xf32>
    %cst_26 = arith.constant dense<0.000000e+00> : vector<24x256xf32>
    %46 = tpu.matmul %43, %45, %cst_26 {dimension_numbers = #tpu.dot_dimension_numbers<[1], [0], [0], [1], [0, 0, 1, 1], [], []>} : vector<24x128xf32>, vector<128x256xf32>, vector<24x256xf32> -> vector<24x256xf32>
    %c0_27 = arith.constant 0 : index
    %c0_28 = arith.constant 0 : index
    %c0_29 = arith.constant 0 : index
    %47 = vector.load %arg10[%c0_27, %c0_28, %c0_29] : memref<2x1x256xf32, #tpu.memory_space<vmem>>, vector<1x1x256xf32>
    %48 = vector.shape_cast %47 : vector<1x1x256xf32> to vector<1x256xf32>
    %49 = vector.broadcast %48 : vector<1x256xf32> to vector<24x256xf32>
    %50 = arith.addf %46, %49 : vector<24x256xf32>
    %c0_30 = arith.constant 0 : index
    %c0_31 = arith.constant 0 : index
    %c0_32 = arith.constant 0 : index
    %51 = vector.load %arg8[%c0_30, %c0_31, %c0_32] : memref<2x128x128xf32, #tpu.memory_space<vmem>>, vector<1x128x128xf32>
    %52 = vector.shape_cast %51 : vector<1x128x128xf32> to vector<128x128xf32>
    %cst_33 = arith.constant dense<0.000000e+00> : vector<24x128xf32>
    %53 = tpu.matmul %42, %52, %cst_33 {dimension_numbers = #tpu.dot_dimension_numbers<[1], [0], [0], [1], [0, 0, 1, 1], [], []>} : vector<24x128xf32>, vector<128x128xf32>, vector<24x128xf32> -> vector<24x128xf32>
    %54 = vector.extract_strided_slice %50 {offsets = [0, 0], sizes = [24, 128], strides = [1, 1]} : vector<24x256xf32> to vector<24x128xf32>
    %55 = arith.addf %53, %54 : vector<24x128xf32>
    %56 = vector.extract_strided_slice %50 {offsets = [0, 128], sizes = [24, 128], strides = [1, 1]} : vector<24x256xf32> to vector<24x128xf32>
    %cst_34 = arith.constant 0.000000e+00 : f32
    %57 = vector.broadcast %cst_34 : f32 to vector<24x128xf32>
    %58 = arith.cmpf ogt, %55, %57 : vector<24x128xf32>
    %cst_35 = arith.constant 2.000000e-01 : f32
    %59 = vector.broadcast %cst_35 : f32 to vector<24x128xf32>
    %60 = arith.mulf %59, %55 : vector<24x128xf32>
    %61 = arith.select %58, %55, %60 : vector<24x128xi1>, vector<24x128xf32>
    %c0_36 = arith.constant 0 : index
    %c0_37 = arith.constant 0 : index
    %c0_38 = arith.constant 0 : index
    %62 = vector.load %arg11[%c0_36, %c0_37, %c0_38] : memref<2x1x128xf32, #tpu.memory_space<vmem>>, vector<1x1x128xf32>
    %63 = vector.shape_cast %62 : vector<1x1x128xf32> to vector<1x128xf32>
    %64 = vector.broadcast %63 : vector<1x128xf32> to vector<24x128xf32>
    %65 = arith.mulf %61, %64 : vector<24x128xf32>
    %cst_39 = arith.constant dense<0.000000e+00> : vector<24x128xf32>
    %66 = tpu.matmul %65, %25, %cst_39 {dimension_numbers = #tpu.dot_dimension_numbers<[1], [0], [0], [1], [0, 0, 1, 1], [], []>} : vector<24x128xf32>, vector<128x128xf32>, vector<24x128xf32> -> vector<24x128xf32>
    %67 = vector.extract_strided_slice %32 {offsets = [0, 0], sizes = [24, 128], strides = [1, 1]} : vector<24x256xf32> to vector<24x128xf32>
    %68 = arith.addf %66, %67 : vector<24x128xf32>
    %cst_40 = arith.constant -1.000000e+30 : f32
    %69 = vector.shape_cast %23 : vector<1x128xi1> to vector<1x128xi1>
    %70 = vector.broadcast %69 : vector<1x128xi1> to vector<24x128xi1>
    %71 = vector.broadcast %cst_40 : f32 to vector<24x128xf32>
    %72 = arith.select %70, %68, %71 : vector<24x128xi1>, vector<24x128xf32>
    %cst_41 = arith.constant dense<0xFF800000> : vector<24xf32>
    %73 = vector.multi_reduction <maximumf>, %72, %cst_41 [1] : vector<24x128xf32> to vector<24xf32>
    %74 = vector.shape_cast %73 : vector<24xf32> to vector<24x1xf32>
    %cst_42 = arith.constant -1.000000e+30 : f32
    %75 = vector.shape_cast %74 : vector<24x1xf32> to vector<24x1xf32>
    %76 = vector.broadcast %75 : vector<24x1xf32> to vector<24x128xf32>
    %77 = vector.broadcast %cst_42 : f32 to vector<24x128xf32>
    %78 = arith.select %10, %76, %77 : vector<24x128xi1>, vector<24x128xf32>
    %cst_43 = arith.constant dense<0xFF800000> : vector<128xf32>
    %79 = vector.multi_reduction <maximumf>, %78, %cst_43 [0] : vector<24x128xf32> to vector<128xf32>
    %80 = vector.shape_cast %79 : vector<128xf32> to vector<1x128xf32>
    %81 = vector.broadcast %80 : vector<1x128xf32> to vector<24x128xf32>
    %82 = arith.mulf %8, %81 : vector<24x128xf32>
    %cst_44 = arith.constant dense<0.000000e+00> : vector<24xf32>
    %83 = vector.multi_reduction <add>, %82, %cst_44 [1] : vector<24x128xf32> to vector<24xf32>
    %84 = vector.shape_cast %83 : vector<24xf32> to vector<24x1xf32>
    %85 = vector.broadcast %84 : vector<24x1xf32> to vector<24x128xf32>
    %86 = arith.subf %68, %85 : vector<24x128xf32>
    %87 = math.exp %86 : vector<24x128xf32>
    %cst_45 = arith.constant 0.000000e+00 : f32
    %88 = vector.shape_cast %23 : vector<1x128xi1> to vector<1x128xi1>
    %89 = vector.broadcast %88 : vector<1x128xi1> to vector<24x128xi1>
    %90 = vector.broadcast %cst_45 : f32 to vector<24x128xf32>
    %91 = arith.select %89, %87, %90 : vector<24x128xi1>, vector<24x128xf32>
    %cst_46 = arith.constant dense<0.000000e+00> : vector<128x128xf32>
    %92 = tpu.matmul %15, %91, %cst_46 {dimension_numbers = #tpu.dot_dimension_numbers<[1], [0], [0], [1], [0, 0, 1, 1], [], []>} : vector<128x24xf32>, vector<24x128xf32>, vector<128x128xf32> -> vector<128x128xf32>
    %cst_47 = arith.constant dense<0.000000e+00> : vector<24x128xf32>
    %93 = tpu.matmul %8, %92, %cst_47 {dimension_numbers = #tpu.dot_dimension_numbers<[1], [0], [0], [1], [0, 0, 1, 1], [], []>} : vector<24x128xf32>, vector<128x128xf32>, vector<24x128xf32> -> vector<24x128xf32>
    %cst_48 = arith.constant 1.000000e-16 : f32
    %94 = vector.broadcast %cst_48 : f32 to vector<24x128xf32>
    %95 = arith.addf %93, %94 : vector<24x128xf32>
    %96 = arith.divf %91, %95 : vector<24x128xf32>
    %cst_49 = arith.constant dense<0.000000e+00> : vector<24x128xf32>
    %97 = tpu.matmul %96, %24, %cst_49 {dimension_numbers = #tpu.dot_dimension_numbers<[1], [0], [0], [1], [0, 0, 1, 1], [], []>} : vector<24x128xf32>, vector<128x128xf32>, vector<24x128xf32> -> vector<24x128xf32>
    %98 = arith.mulf %97, %56 : vector<24x128xf32>
    %cst_50 = arith.constant dense<0.000000e+00> : vector<128x128xf32>
    %99 = tpu.matmul %15, %98, %cst_50 {dimension_numbers = #tpu.dot_dimension_numbers<[1], [0], [0], [1], [0, 0, 1, 1], [], []>} : vector<128x24xf32>, vector<24x128xf32>, vector<128x128xf32> -> vector<128x128xf32>
    %cst_51 = arith.constant 0.000000e+00 : f32
    %100 = vector.broadcast %cst_51 : f32 to vector<128x128xf32>
    %101 = arith.maximumf %99, %100 : vector<128x128xf32>
    %c0_52 = arith.constant 0 : index
    %c0_53 = arith.constant 0 : index
    %c0_54 = arith.constant 0 : index
    %102 = vector.load %arg13[%c0_52, %c0_53, %c0_54] : memref<2x128x128xf32, #tpu.memory_space<vmem>>, vector<1x128x128xf32>
    %103 = vector.shape_cast %102 : vector<1x128x128xf32> to vector<128x128xf32>
    %cst_55 = arith.constant dense<0.000000e+00> : vector<128x128xf32>
    %104 = tpu.matmul %40, %103, %cst_55 {dimension_numbers = #tpu.dot_dimension_numbers<[1], [0], [0], [1], [0, 0, 1, 1], [], []>} : vector<128x128xf32>, vector<128x128xf32>, vector<128x128xf32> -> vector<128x128xf32>
    %c0_56 = arith.constant 0 : index
    %c0_57 = arith.constant 0 : index
    %c0_58 = arith.constant 0 : index
    %105 = vector.load %arg14[%c0_56, %c0_57, %c0_58] : memref<2x1x128xf32, #tpu.memory_space<vmem>>, vector<1x1x128xf32>
    %106 = vector.shape_cast %105 : vector<1x1x128xf32> to vector<1x128xf32>
    %107 = vector.broadcast %106 : vector<1x128xf32> to vector<128x128xf32>
    %108 = arith.addf %104, %107 : vector<128x128xf32>
    %cst_59 = arith.constant 0.000000e+00 : f32
    %109 = vector.broadcast %cst_59 : f32 to vector<128x128xf32>
    %110 = arith.maximumf %108, %109 : vector<128x128xf32>
    %111 = arith.addf %101, %110 : vector<128x128xf32>
    %cst_60 = arith.constant dense<0.000000e+00> : vector<48x128xf32>
    %112 = tpu.matmul %7, %111, %cst_60 {dimension_numbers = #tpu.dot_dimension_numbers<[1], [0], [0], [1], [0, 0, 1, 1], [], []>} : vector<48x128xf32>, vector<128x128xf32>, vector<48x128xf32> -> vector<48x128xf32>
    %113 = vector.extract_strided_slice %112 {offsets = [0, 0], sizes = [24, 128], strides = [1, 1]} : vector<48x128xf32> to vector<24x128xf32>
    %114 = vector.extract_strided_slice %112 {offsets = [24, 0], sizes = [24, 128], strides = [1, 1]} : vector<48x128xf32> to vector<24x128xf32>
    %c1 = arith.constant 1 : index
    %c0_61 = arith.constant 0 : index
    %c0_62 = arith.constant 0 : index
    %115 = vector.load %arg9[%c1, %c0_61, %c0_62] : memref<2x128x256xf32, #tpu.memory_space<vmem>>, vector<1x128x256xf32>
    %116 = vector.shape_cast %115 : vector<1x128x256xf32> to vector<128x256xf32>
    %cst_63 = arith.constant dense<0.000000e+00> : vector<24x256xf32>
    %117 = tpu.matmul %114, %116, %cst_63 {dimension_numbers = #tpu.dot_dimension_numbers<[1], [0], [0], [1], [0, 0, 1, 1], [], []>} : vector<24x128xf32>, vector<128x256xf32>, vector<24x256xf32> -> vector<24x256xf32>
    %c1_64 = arith.constant 1 : index
    %c0_65 = arith.constant 0 : index
    %c0_66 = arith.constant 0 : index
    %118 = vector.load %arg10[%c1_64, %c0_65, %c0_66] : memref<2x1x256xf32, #tpu.memory_space<vmem>>, vector<1x1x256xf32>
    %119 = vector.shape_cast %118 : vector<1x1x256xf32> to vector<1x256xf32>
    %120 = vector.broadcast %119 : vector<1x256xf32> to vector<24x256xf32>
    %121 = arith.addf %117, %120 : vector<24x256xf32>
    %c1_67 = arith.constant 1 : index
    %c0_68 = arith.constant 0 : index
    %c0_69 = arith.constant 0 : index
    %122 = vector.load %arg8[%c1_67, %c0_68, %c0_69] : memref<2x128x128xf32, #tpu.memory_space<vmem>>, vector<1x128x128xf32>
    %123 = vector.shape_cast %122 : vector<1x128x128xf32> to vector<128x128xf32>
    %cst_70 = arith.constant dense<0.000000e+00> : vector<24x128xf32>
    %124 = tpu.matmul %113, %123, %cst_70 {dimension_numbers = #tpu.dot_dimension_numbers<[1], [0], [0], [1], [0, 0, 1, 1], [], []>} : vector<24x128xf32>, vector<128x128xf32>, vector<24x128xf32> -> vector<24x128xf32>
    %125 = vector.extract_strided_slice %121 {offsets = [0, 0], sizes = [24, 128], strides = [1, 1]} : vector<24x256xf32> to vector<24x128xf32>
    %126 = arith.addf %124, %125 : vector<24x128xf32>
    %127 = vector.extract_strided_slice %121 {offsets = [0, 128], sizes = [24, 128], strides = [1, 1]} : vector<24x256xf32> to vector<24x128xf32>
    %cst_71 = arith.constant 0.000000e+00 : f32
    %128 = vector.broadcast %cst_71 : f32 to vector<24x128xf32>
    %129 = arith.cmpf ogt, %126, %128 : vector<24x128xf32>
    %cst_72 = arith.constant 2.000000e-01 : f32
    %130 = vector.broadcast %cst_72 : f32 to vector<24x128xf32>
    %131 = arith.mulf %130, %126 : vector<24x128xf32>
    %132 = arith.select %129, %126, %131 : vector<24x128xi1>, vector<24x128xf32>
    %c1_73 = arith.constant 1 : index
    %c0_74 = arith.constant 0 : index
    %c0_75 = arith.constant 0 : index
    %133 = vector.load %arg11[%c1_73, %c0_74, %c0_75] : memref<2x1x128xf32, #tpu.memory_space<vmem>>, vector<1x1x128xf32>
    %134 = vector.shape_cast %133 : vector<1x1x128xf32> to vector<1x128xf32>
    %135 = vector.broadcast %134 : vector<1x128xf32> to vector<24x128xf32>
    %136 = arith.mulf %132, %135 : vector<24x128xf32>
    %cst_76 = arith.constant dense<0.000000e+00> : vector<24x128xf32>
    %137 = tpu.matmul %136, %25, %cst_76 {dimension_numbers = #tpu.dot_dimension_numbers<[1], [0], [0], [1], [0, 0, 1, 1], [], []>} : vector<24x128xf32>, vector<128x128xf32>, vector<24x128xf32> -> vector<24x128xf32>
    %138 = vector.extract_strided_slice %32 {offsets = [0, 128], sizes = [24, 128], strides = [1, 1]} : vector<24x256xf32> to vector<24x128xf32>
    %139 = arith.addf %137, %138 : vector<24x128xf32>
    %cst_77 = arith.constant -1.000000e+30 : f32
    %140 = vector.shape_cast %23 : vector<1x128xi1> to vector<1x128xi1>
    %141 = vector.broadcast %140 : vector<1x128xi1> to vector<24x128xi1>
    %142 = vector.broadcast %cst_77 : f32 to vector<24x128xf32>
    %143 = arith.select %141, %139, %142 : vector<24x128xi1>, vector<24x128xf32>
    %cst_78 = arith.constant dense<0xFF800000> : vector<24xf32>
    %144 = vector.multi_reduction <maximumf>, %143, %cst_78 [1] : vector<24x128xf32> to vector<24xf32>
    %145 = vector.shape_cast %144 : vector<24xf32> to vector<24x1xf32>
    %cst_79 = arith.constant -1.000000e+30 : f32
    %146 = vector.shape_cast %145 : vector<24x1xf32> to vector<24x1xf32>
    %147 = vector.broadcast %146 : vector<24x1xf32> to vector<24x128xf32>
    %148 = vector.broadcast %cst_79 : f32 to vector<24x128xf32>
    %149 = arith.select %10, %147, %148 : vector<24x128xi1>, vector<24x128xf32>
    %cst_80 = arith.constant dense<0xFF800000> : vector<128xf32>
    %150 = vector.multi_reduction <maximumf>, %149, %cst_80 [0] : vector<24x128xf32> to vector<128xf32>
    %151 = vector.shape_cast %150 : vector<128xf32> to vector<1x128xf32>
    %152 = vector.broadcast %151 : vector<1x128xf32> to vector<24x128xf32>
    %153 = arith.mulf %8, %152 : vector<24x128xf32>
    %cst_81 = arith.constant dense<0.000000e+00> : vector<24xf32>
    %154 = vector.multi_reduction <add>, %153, %cst_81 [1] : vector<24x128xf32> to vector<24xf32>
    %155 = vector.shape_cast %154 : vector<24xf32> to vector<24x1xf32>
    %156 = vector.broadcast %155 : vector<24x1xf32> to vector<24x128xf32>
    %157 = arith.subf %139, %156 : vector<24x128xf32>
    %158 = math.exp %157 : vector<24x128xf32>
    %cst_82 = arith.constant 0.000000e+00 : f32
    %159 = vector.shape_cast %23 : vector<1x128xi1> to vector<1x128xi1>
    %160 = vector.broadcast %159 : vector<1x128xi1> to vector<24x128xi1>
    %161 = vector.broadcast %cst_82 : f32 to vector<24x128xf32>
    %162 = arith.select %160, %158, %161 : vector<24x128xi1>, vector<24x128xf32>
    %cst_83 = arith.constant dense<0.000000e+00> : vector<128x128xf32>
    %163 = tpu.matmul %15, %162, %cst_83 {dimension_numbers = #tpu.dot_dimension_numbers<[1], [0], [0], [1], [0, 0, 1, 1], [], []>} : vector<128x24xf32>, vector<24x128xf32>, vector<128x128xf32> -> vector<128x128xf32>
    %cst_84 = arith.constant dense<0.000000e+00> : vector<24x128xf32>
    %164 = tpu.matmul %8, %163, %cst_84 {dimension_numbers = #tpu.dot_dimension_numbers<[1], [0], [0], [1], [0, 0, 1, 1], [], []>} : vector<24x128xf32>, vector<128x128xf32>, vector<24x128xf32> -> vector<24x128xf32>
    %cst_85 = arith.constant 1.000000e-16 : f32
    %165 = vector.broadcast %cst_85 : f32 to vector<24x128xf32>
    %166 = arith.addf %164, %165 : vector<24x128xf32>
    %167 = arith.divf %162, %166 : vector<24x128xf32>
    %cst_86 = arith.constant dense<0.000000e+00> : vector<24x128xf32>
    %168 = tpu.matmul %167, %24, %cst_86 {dimension_numbers = #tpu.dot_dimension_numbers<[1], [0], [0], [1], [0, 0, 1, 1], [], []>} : vector<24x128xf32>, vector<128x128xf32>, vector<24x128xf32> -> vector<24x128xf32>
    %169 = arith.mulf %168, %127 : vector<24x128xf32>
    %cst_87 = arith.constant dense<0.000000e+00> : vector<128x128xf32>
    %170 = tpu.matmul %15, %169, %cst_87 {dimension_numbers = #tpu.dot_dimension_numbers<[1], [0], [0], [1], [0, 0, 1, 1], [], []>} : vector<128x24xf32>, vector<24x128xf32>, vector<128x128xf32> -> vector<128x128xf32>
    %cst_88 = arith.constant 0.000000e+00 : f32
    %171 = vector.broadcast %cst_88 : f32 to vector<128x128xf32>
    %172 = arith.maximumf %170, %171 : vector<128x128xf32>
    %c1_89 = arith.constant 1 : index
    %c0_90 = arith.constant 0 : index
    %c0_91 = arith.constant 0 : index
    %173 = vector.load %arg13[%c1_89, %c0_90, %c0_91] : memref<2x128x128xf32, #tpu.memory_space<vmem>>, vector<1x128x128xf32>
    %174 = vector.shape_cast %173 : vector<1x128x128xf32> to vector<128x128xf32>
    %cst_92 = arith.constant dense<0.000000e+00> : vector<128x128xf32>
    %175 = tpu.matmul %111, %174, %cst_92 {dimension_numbers = #tpu.dot_dimension_numbers<[1], [0], [0], [1], [0, 0, 1, 1], [], []>} : vector<128x128xf32>, vector<128x128xf32>, vector<128x128xf32> -> vector<128x128xf32>
    %c1_93 = arith.constant 1 : index
    %c0_94 = arith.constant 0 : index
    %c0_95 = arith.constant 0 : index
    %176 = vector.load %arg14[%c1_93, %c0_94, %c0_95] : memref<2x1x128xf32, #tpu.memory_space<vmem>>, vector<1x1x128xf32>
    %177 = vector.shape_cast %176 : vector<1x1x128xf32> to vector<1x128xf32>
    %178 = vector.broadcast %177 : vector<1x128xf32> to vector<128x128xf32>
    %179 = arith.addf %175, %178 : vector<128x128xf32>
    %cst_96 = arith.constant 0.000000e+00 : f32
    %180 = vector.broadcast %cst_96 : f32 to vector<128x128xf32>
    %181 = arith.maximumf %179, %180 : vector<128x128xf32>
    %182 = arith.addf %172, %181 : vector<128x128xf32>
    %c0_97 = arith.constant 0 : index
    %c0_98 = arith.constant 0 : index
    %183 = vector.load %arg15[%c0_97, %c0_98] : memref<128x128xf32, #tpu.memory_space<vmem>>, vector<128x128xf32>
    tpu.vector_store %arg15[%c0_97, %c0_98], %182 {strides = array<i32>} : memref<128x128xf32, #tpu.memory_space<vmem>>, vector<128x128xf32>,
    return
  }
}

</mosaic_0001>

<llo_original>
// kernel: tpu_custom_call.1
$region0: #{tpu_custom_call.1}
  #allocation0 [shape = 'u32[]', space=smem, size = 0x4, offset = 0x4, fixed_abs, tag = 'smem constant byte address 0x4 - core index']
  #allocation1 [shape = 'u32[72,128]{1,0:T(1,128)}', space=vmem, size = 0x9000, scoped, tag = 'internal scratch']
  %s0 = inlined_call_operand.vmem [shape: s32[48,1], index: 0, kind: input, shape index: {}]
  %s1 = inlined_call_operand.vmem [shape: s32[1,24], index: 1, kind: input, shape index: {}]
  %s2 = inlined_call_operand.vmem [shape: s32[24,1], index: 2, kind: input, shape index: {}]
  %s3 = inlined_call_operand.hbm [shape: f32[128,128], index: 3, kind: input, shape index: {}]
  %s4 = inlined_call_operand.hbm [shape: f32[128,128], index: 4, kind: input, shape index: {}]
  %s5 = inlined_call_operand.vmem [shape: f32[1,128], index: 5, kind: input, shape index: {}]
  %s6 = inlined_call_operand.hbm [shape: f32[128,128], index: 6, kind: input, shape index: {}]
  %s7 = inlined_call_operand.hbm [shape: f32[128,128], index: 7, kind: input, shape index: {}]
  %s8 = inlined_call_operand.hbm [shape: f32[2,128,128], index: 8, kind: input, shape index: {}]
  %s9 = inlined_call_operand.hbm [shape: f32[2,128,256], index: 9, kind: input, shape index: {}]
  %s10 = inlined_call_operand.vmem [shape: f32[2,1,256], index: 10, kind: input, shape index: {}]
  %s11 = inlined_call_operand.vmem [shape: f32[2,1,128], index: 11, kind: input, shape index: {}]
  %s12 = inlined_call_operand.hbm [shape: f32[128,256], index: 12, kind: input, shape index: {}]
  %s13 = inlined_call_operand.hbm [shape: f32[2,128,128], index: 13, kind: input, shape index: {}]
  %s14 = inlined_call_operand.vmem [shape: f32[2,1,128], index: 14, kind: input, shape index: {}]
  %s15 = inlined_call_operand.hbm [shape: f32[128,128], index: 15, kind: output, shape index: {}]
  %s16 = sld [smem:[#allocation0]]
  $region102: #{tpu_custom_call.1} parent=0
    _
  %s18 = ssub.s32 1, %s16
  %s19 = scalar_select 0, %s18, %s16
  $region1: #{tpu_custom_call.1} parent=0
    #allocation2 [shape = 'u8[65536]{0}', space=vmem, size = 0x10000, scoped, tag = 'input window, operand 3, single buffered']
    #allocation3 [shape = 's32[1]{0}', space=sflag, size = 0x4, scoped, tag = 'scoped memory for tpu_custom_call.1']
    #allocation4 [shape = 's32[1]{0}', space=sflag, size = 0x4, scoped, tag = 'scoped memory for tpu_custom_call.1']
    #allocation5 [shape = 'u8[65536]{0}', space=vmem, size = 0x10000, scoped, tag = 'input window, operand 4, single buffered']
    #allocation6 [shape = 's32[1]{0}', space=sflag, size = 0x4, scoped, tag = 'scoped memory for tpu_custom_call.1']
    #allocation7 [shape = 'u8[65536]{0}', space=vmem, size = 0x10000, scoped, tag = 'input window, operand 6, single buffered']
    #allocation8 [shape = 'u8[65536]{0}', space=vmem, size = 0x10000, scoped, tag = 'input window, operand 7, single buffered']
    #allocation9 [shape = 's32[1]{0}', space=sflag, size = 0x4, scoped, tag = 'scoped memory for tpu_custom_call.1']
    #allocation10 [shape = 'u8[131072]{0}', space=vmem, size = 0x20000, scoped, tag = 'input window, operand 8, single buffered']
    #allocation11 [shape = 'u8[262144]{0}', space=vmem, size = 0x40000, scoped, tag = 'input window, operand 9, single buffered']
    #allocation12 [shape = 's32[1]{0}', space=sflag, size = 0x4, scoped, tag = 'scoped memory for tpu_custom_call.1']
    #allocation13 [shape = 'u8[131072]{0}', space=vmem, size = 0x20000, scoped, tag = 'input window, operand 12, single buffered']
    #allocation14 [shape = 'u8[131072]{0}', space=vmem, size = 0x20000, scoped, tag = 'input window, operand 13, single buffered']
    #allocation15 [shape = 's32[1]{0}', space=sflag, size = 0x4, scoped, tag = 'scoped memory for tpu_custom_call.1']
    #allocation16 [shape = 'u8[65536]{0}', space=vmem, size = 0x10000, scoped, tag = 'output window, operand 0, single buffered']
    %20 = vsyncpa [#allocation3], 0
    %21 = vsyncpa [#allocation6], 0
    %22 = vsyncpa [#allocation9], 0
    %23 = vsyncpa [#allocation12], 0
    %24 = vsyncpa [#allocation15], 0
    %25 = vsyncpa [#allocation4], 0
    // Predicated region
    $region2: #{tpu_custom_call.1} parent=1 // pred_check
      _
    $region3: #{tpu_custom_call.1} parent=1 // pred_check_branch
      %27 = sbr.rel (0) target = $region5
    $region4: #{tpu_custom_call.1} parent=1 // pred_region
      _
    $region5: #{tpu_custom_call.1} parent=1 // pred_fallthru
      _
    // Predicated region
    $region6: #{tpu_custom_call.1} parent=1 // pred_check
      _
    $region7: #{tpu_custom_call.1} parent=1 // pred_check_branch
      %29 = sbr.rel (0) target = $region9
    $region8: #{tpu_custom_call.1} parent=1 // pred_region
      _
    $region9: #{tpu_custom_call.1} parent=1 // pred_fallthru
      _
    // Predicated region
    $region10: #{tpu_custom_call.1} parent=1 // pred_check
      _
    $region11: #{tpu_custom_call.1} parent=1 // pred_check_branch
      %31 = sbr.rel (0) target = $region13
    $region12: #{tpu_custom_call.1} parent=1 // pred_region
      _
    $region13: #{tpu_custom_call.1} parent=1 // pred_fallthru
      _
    // Predicated region
    $region14: #{tpu_custom_call.1} parent=1 // pred_check
      _
    $region15: #{tpu_custom_call.1} parent=1 // pred_check_branch
      %33 = sbr.rel (0) target = $region17
    $region16: #{tpu_custom_call.1} parent=1 // pred_region
      %35 = vsyncadd [#allocation3], 0
      %s36 = sshll.u32 %s3, 4
      %s37 = int_to_ptr.hbm [resolvable:$true] %s36
      %s38 = sshll.u32 [#allocation2], 4
      %s39 = int_to_ptr.vmem [resolvable:$true] %s38
      %44 = dma.hbm_to_vmem [thread:$0]  %s37, 2048, %s39, [#allocation3], 128, 128, 8
    $region17: #{tpu_custom_call.1} parent=1 // pred_fallthru
      _
    // Predicated region
    $region18: #{tpu_custom_call.1} parent=1 // pred_check
      _
    $region19: #{tpu_custom_call.1} parent=1 // pred_check_branch
      %46 = sbr.rel (0) target = $region21
    $region20: #{tpu_custom_call.1} parent=1 // pred_region
      %48 = vsyncadd [#allocation6], 0
      %s49 = sshll.u32 %s4, 4
      %s50 = int_to_ptr.hbm [resolvable:$true] %s49
      %s51 = sshll.u32 [#allocation5], 4
      %s52 = int_to_ptr.vmem [resolvable:$true] %s51
      %57 = dma.hbm_to_vmem [thread:$0]  %s50, 2048, %s52, [#allocation6], 128, 128, 8
    $region21: #{tpu_custom_call.1} parent=1 // pred_fallthru
      _
    // Predicated region
    $region22: #{tpu_custom_call.1} parent=1 // pred_check
      _
    $region23: #{tpu_custom_call.1} parent=1 // pred_check_branch
      %59 = sbr.rel (0) target = $region25
    $region24: #{tpu_custom_call.1} parent=1 // pred_region
      _
    $region25: #{tpu_custom_call.1} parent=1 // pred_fallthru
      _
    // Predicated region
    $region26: #{tpu_custom_call.1} parent=1 // pred_check
      _
    $region27: #{tpu_custom_call.1} parent=1 // pred_check_branch
      %61 = sbr.rel (0) target = $region29
    $region28: #{tpu_custom_call.1} parent=1 // pred_region
      %63 = vsyncadd [#allocation6], 0
      %s64 = sshll.u32 %s6, 4
      %s65 = int_to_ptr.hbm [resolvable:$true] %s64
      %s66 = sshll.u32 [#allocation7], 4
      %s67 = int_to_ptr.vmem [resolvable:$true] %s66
      %72 = dma.hbm_to_vmem [thread:$0]  %s65, 2048, %s67, [#allocation6], 128, 128, 8
    $region29: #{tpu_custom_call.1} parent=1 // pred_fallthru
      _
    // Predicated region
    $region30: #{tpu_custom_call.1} parent=1 // pred_check
      _
    $region31: #{tpu_custom_call.1} parent=1 // pred_check_branch
      %74 = sbr.rel (0) target = $region33
    $region32: #{tpu_custom_call.1} parent=1 // pred_region
      %76 = vsyncadd [#allocation9], 0
      %s77 = sshll.u32 %s7, 4
      %s78 = int_to_ptr.hbm [resolvable:$true] %s77
      %s79 = sshll.u32 [#allocation8], 4
      %s80 = int_to_ptr.vmem [resolvable:$true] %s79
      %85 = dma.hbm_to_vmem [thread:$0]  %s78, 2048, %s80, [#allocation9], 128, 128, 8
    $region33: #{tpu_custom_call.1} parent=1 // pred_fallthru
      _
    // Predicated region
    $region34: #{tpu_custom_call.1} parent=1 // pred_check
      _
    $region35: #{tpu_custom_call.1} parent=1 // pred_check_branch
      %87 = sbr.rel (0) target = $region37
    $region36: #{tpu_custom_call.1} parent=1 // pred_region
      %89 = vsyncadd [#allocation9], 0
      %s90 = sshll.u32 %s8, 4
      %s91 = int_to_ptr.hbm [resolvable:$true] %s90
      %s92 = sshll.u32 [#allocation10], 4
      %s93 = int_to_ptr.vmem [resolvable:$true] %s92
      %98 = dma.hbm_to_vmem [thread:$0]  %s91, 4096, %s93, [#allocation9], 128, 128, 8
    $region37: #{tpu_custom_call.1} parent=1 // pred_fallthru
      _
    // Predicated region
    $region38: #{tpu_custom_call.1} parent=1 // pred_check
      _
    $region39: #{tpu_custom_call.1} parent=1 // pred_check_branch
      %100 = sbr.rel (0) target = $region41
    $region40: #{tpu_custom_call.1} parent=1 // pred_region
      %102 = vsyncadd [#allocation12], 0
      %s103 = sshll.u32 %s9, 4
      %s104 = int_to_ptr.hbm [resolvable:$true] %s103
      %s105 = sshll.u32 [#allocation11], 4
      %s106 = int_to_ptr.vmem [resolvable:$true] %s105
      %111 = dma.hbm_to_vmem [thread:$0]  %s104, 8192, %s106, [#allocation12], 256, 256, 16
    $region41: #{tpu_custom_call.1} parent=1 // pred_fallthru
      _
    // Predicated region
    $region42: #{tpu_custom_call.1} parent=1 // pred_check
      _
    $region43: #{tpu_custom_call.1} parent=1 // pred_check_branch
      %113 = sbr.rel (0) target = $region45
    $region44: #{tpu_custom_call.1} parent=1 // pred_region
      _
    $region45: #{tpu_custom_call.1} parent=1 // pred_fallthru
      _
    // Predicated region
    $region46: #{tpu_custom_call.1} parent=1 // pred_check
      _
    $region47: #{tpu_custom_call.1} parent=1 // pred_check_branch
      %115 = sbr.rel (0) target = $region49
    $region48: #{tpu_custom_call.1} parent=1 // pred_region
      _
    $region49: #{tpu_custom_call.1} parent=1 // pred_fallthru
      _
    // Predicated region
    $region50: #{tpu_custom_call.1} parent=1 // pred_check
      _
    $region51: #{tpu_custom_call.1} parent=1 // pred_check_branch
      %117 = sbr.rel (0) target = $region53
    $region52: #{tpu_custom_call.1} parent=1 // pred_region
      %119 = vsyncadd [#allocation12], 0
      %s120 = sshll.u32 %s12, 4
      %s121 = int_to_ptr.hbm [resolvable:$true] %s120
      %s122 = sshll.u32 [#allocation13], 4
      %s123 = int_to_ptr.vmem [resolvable:$true] %s122
      %128 = dma.hbm_to_vmem [thread:$0]  %s121, 4096, %s123, [#allocation12], 256, 256, 16
    $region53: #{tpu_custom_call.1} parent=1 // pred_fallthru
      _
    // Predicated region
    $region54: #{tpu_custom_call.1} parent=1 // pred_check
      _
    $region55: #{tpu_custom_call.1} parent=1 // pred_check_branch
      %130 = sbr.rel (0) target = $region57
    $region56: #{tpu_custom_call.1} parent=1 // pred_region
      %132 = vsyncadd [#allocation15], 0
      %s133 = sshll.u32 %s13, 4
      %s134 = int_to_ptr.hbm [resolvable:$true] %s133
      %s135 = sshll.u32 [#allocation14], 4
      %s136 = int_to_ptr.vmem [resolvable:$true] %s135
      %141 = dma.hbm_to_vmem [thread:$0]  %s134, 4096, %s136, [#allocation15], 128, 128, 8
    $region57: #{tpu_custom_call.1} parent=1 // pred_fallthru
      _
    // Predicated region
    $region58: #{tpu_custom_call.1} parent=1 // pred_check
      _
    $region59: #{tpu_custom_call.1} parent=1 // pred_check_branch
      %143 = sbr.rel (0) target = $region61
    $region60: #{tpu_custom_call.1} parent=1 // pred_region
      _
    $region61: #{tpu_custom_call.1} parent=1 // pred_fallthru
      _
    // Predicated region
    $region62: #{tpu_custom_call.1} parent=1 // pred_check
      _
    $region63: #{tpu_custom_call.1} parent=1 // pred_check_branch
      %145 = sbr.rel (0) target = $region65
    $region64: #{tpu_custom_call.1} parent=1 // pred_region
      %147 = dma.done [#allocation3], 2048
    $region65: #{tpu_custom_call.1} parent=1 // pred_fallthru
      _
    // Predicated region
    $region66: #{tpu_custom_call.1} parent=1 // pred_check
      _
    $region67: #{tpu_custom_call.1} parent=1 // pred_check_branch
      %149 = sbr.rel (0) target = $region69
    $region68: #{tpu_custom_call.1} parent=1 // pred_region
      %151 = dma.done [#allocation6], 2048
    $region69: #{tpu_custom_call.1} parent=1 // pred_fallthru
      _
    // Predicated region
    $region70: #{tpu_custom_call.1} parent=1 // pred_check
      _
    $region71: #{tpu_custom_call.1} parent=1 // pred_check_branch
      %153 = sbr.rel (0) target = $region73
    $region72: #{tpu_custom_call.1} parent=1 // pred_region
      %155 = dma.done [#allocation6], 2048
    $region73: #{tpu_custom_call.1} parent=1 // pred_fallthru
      _
    // Predicated region
    $region74: #{tpu_custom_call.1} parent=1 // pred_check
      _
    $region75: #{tpu_custom_call.1} parent=1 // pred_check_branch
      %157 = sbr.rel (0) target = $region77
    $region76: #{tpu_custom_call.1} parent=1 // pred_region
      %159 = dma.done [#allocation9], 2048
    $region77: #{tpu_custom_call.1} parent=1 // pred_fallthru
      _
    // Predicated region
    $region78: #{tpu_custom_call.1} parent=1 // pred_check
      _
    $region79: #{tpu_custom_call.1} parent=1 // pred_check_branch
      %161 = sbr.rel (0) target = $region81
    $region80: #{tpu_custom_call.1} parent=1 // pred_region
      %163 = dma.done [#allocation9], 4096
    $region81: #{tpu_custom_call.1} parent=1 // pred_fallthru
      _
    // Predicated region
    $region82: #{tpu_custom_call.1} parent=1 // pred_check
      _
    $region83: #{tpu_custom_call.1} parent=1 // pred_check_branch
      %165 = sbr.rel (0) target = $region85
    $region84: #{tpu_custom_call.1} parent=1 // pred_region
      %167 = dma.done [#allocation12], 8192
    $region85: #{tpu_custom_call.1} parent=1 // pred_fallthru
      _
    // Predicated region
    $region86: #{tpu_custom_call.1} parent=1 // pred_check
      _
    $region87: #{tpu_custom_call.1} parent=1 // pred_check_branch
      %169 = sbr.rel (0) target = $region89
    $region88: #{tpu_custom_call.1} parent=1 // pred_region
      %171 = dma.done [#allocation12], 4096
    $region89: #{tpu_custom_call.1} parent=1 // pred_fallthru
      _
    // Predicated region
    $region90: #{tpu_custom_call.1} parent=1 // pred_check
      _
    $region91: #{tpu_custom_call.1} parent=1 // pred_check_branch
      %173 = sbr.rel (0) target = $region93
    $region92: #{tpu_custom_call.1} parent=1 // pred_region
      %175 = dma.done [#allocation15], 4096
    $region93: #{tpu_custom_call.1} parent=1 // pred_fallthru
      _
    %v176 = vld [vmem:[%s0] sm:$0xff]
    %v177 = vld [vmem:[%s0 + $0x8] sm:$0xff]
    %v178 = vld [vmem:[%s0 + $0x10] sm:$0xff]
    %v179 = vld [vmem:[%s0 + $0x18] sm:$0xff]
    %v180 = vld [vmem:[%s0 + $0x20] sm:$0xff]
    %v181 = vld [vmem:[%s0 + $0x28] sm:$0xff]
    %v182 = vld [vmem:[%s1] sm:$0x1]
    %v183 = vld [vmem:[%s2] sm:$0xff]
    %v184 = vld [vmem:[%s2 + $0x8] sm:$0xff]
    %v185 = vld [vmem:[%s2 + $0x10] sm:$0xff]
    %v186 = vlaneseq
    %v187 = vand.u32 %v186, 127
    %188 = vset.pattern.permute.xlu0 0
    %189 = vperm.xlu0 %188, %v176
    %v190 = vpop.permute.xlu0 %189
    %191 = vset.pattern.permute.xlu0 0
    %192 = vperm.xlu0 %191, %v177
    %v193 = vpop.permute.xlu0 %192
    %194 = vset.pattern.permute.xlu0 0
    %195 = vperm.xlu0 %194, %v178
    %v196 = vpop.permute.xlu0 %195
    %197 = vset.pattern.permute.xlu0 0
    %198 = vperm.xlu0 %197, %v179
    %v199 = vpop.permute.xlu0 %198
    %200 = vset.pattern.permute.xlu0 0
    %201 = vperm.xlu0 %200, %v180
    %v202 = vpop.permute.xlu0 %201
    %203 = vset.pattern.permute.xlu0 0
    %204 = vperm.xlu0 %203, %v181
    %v205 = vpop.permute.xlu0 %204
    %vm206 = vcmp.eq.s32.totalorder %v187, %v190
    %vm207 = vcmp.eq.s32.totalorder %v187, %v193
    %vm208 = vcmp.eq.s32.totalorder %v187, %v196
    %vm209 = vcmp.eq.s32.totalorder %v187, %v199
    %vm210 = vcmp.eq.s32.totalorder %v187, %v202
    %vm211 = vcmp.eq.s32.totalorder %v187, %v205
    %v212 = vsel %vm206, 1, 0
    %v213 = vsel %vm207, 1, 0
    %v214 = vsel %vm208, 1, 0
    %v215 = vsel %vm209, 1, 0
    %v216 = vsel %vm210, 1, 0
    %v217 = vsel %vm211, 1, 0
    %v218 = vcvt.s32.f32 %v212
    %v219 = vcvt.s32.f32 %v213
    %v220 = vcvt.s32.f32 %v214
    %v221 = vcvt.s32.f32 %v215
    %v222 = vcvt.s32.f32 %v216
    %v223 = vcvt.s32.f32 %v217
    %vm224 = vcmp.ne.f32.partialorder %v218, 0.0
    %vm225 = vcmp.ne.f32.partialorder %v219, 0.0
    %vm226 = vcmp.ne.f32.partialorder %v220, 0.0
    %v227 = vlaneseq
    %v228 = vshrl.u32 %v227, 7
    %v229 = vadd.s32 %v228, 8
    %v230 = vadd.s32 %v228, 16
    %v231 = vadd.s32 %v228, 24
    %v232 = vadd.s32 %v228, 32
    %v233 = vadd.s32 %v228, 40
    %v234 = vadd.s32 %v228, 48
    %v235 = vadd.s32 %v228, 56
    %v236 = vadd.s32 %v228, 64
    %v237 = vadd.s32 %v228, 72
    %v238 = vadd.s32 %v228, 80
    %v239 = vadd.s32 %v228, 88
    %v240 = vadd.s32 %v228, 96
    %v241 = vadd.s32 %v228, 104
    %v242 = vadd.s32 %v228, 112
    %v243 = vadd.s32 %v228, 120
    %v244 = vperm.slane %v182, 0
    %vm245 = vcmp.eq.s32.totalorder %v228, %v244
    %vm246 = vcmp.eq.s32.totalorder %v229, %v244
    %vm247 = vcmp.eq.s32.totalorder %v230, %v244
    %vm248 = vcmp.eq.s32.totalorder %v231, %v244
    %vm249 = vcmp.eq.s32.totalorder %v232, %v244
    %vm250 = vcmp.eq.s32.totalorder %v233, %v244
    %vm251 = vcmp.eq.s32.totalorder %v234, %v244
    %vm252 = vcmp.eq.s32.totalorder %v235, %v244
    %vm253 = vcmp.eq.s32.totalorder %v236, %v244
    %vm254 = vcmp.eq.s32.totalorder %v237, %v244
    %vm255 = vcmp.eq.s32.totalorder %v238, %v244
    %vm256 = vcmp.eq.s32.totalorder %v239, %v244
    %vm257 = vcmp.eq.s32.totalorder %v240, %v244
    %vm258 = vcmp.eq.s32.totalorder %v241, %v244
    %vm259 = vcmp.eq.s32.totalorder %v242, %v244
    %vm260 = vcmp.eq.s32.totalorder %v243, %v244
    %v261 = vsel %vm245, 1, 0
    %v262 = vsel %vm246, 1, 0
    %v263 = vsel %vm247, 1, 0
    %v264 = vsel %vm248, 1, 0
    %v265 = vsel %vm249, 1, 0
    %v266 = vsel %vm250, 1, 0
    %v267 = vsel %vm251, 1, 0
    %v268 = vsel %vm252, 1, 0
    %v269 = vsel %vm253, 1, 0
    %v270 = vsel %vm254, 1, 0
    %v271 = vsel %vm255, 1, 0
    %v272 = vsel %vm256, 1, 0
    %v273 = vsel %vm257, 1, 0
    %v274 = vsel %vm258, 1, 0
    %v275 = vsel %vm259, 1, 0
    %v276 = vsel %vm260, 1, 0
    %v277 = vcvt.s32.f32 %v261
    %v278 = vcvt.s32.f32 %v262
    %v279 = vcvt.s32.f32 %v263
    %v280 = vcvt.s32.f32 %v264
    %v281 = vcvt.s32.f32 %v265
    %v282 = vcvt.s32.f32 %v266
    %v283 = vcvt.s32.f32 %v267
    %v284 = vcvt.s32.f32 %v268
    %v285 = vcvt.s32.f32 %v269
    %v286 = vcvt.s32.f32 %v270
    %v287 = vcvt.s32.f32 %v271
    %v288 = vcvt.s32.f32 %v272
    %v289 = vcvt.s32.f32 %v273
    %v290 = vcvt.s32.f32 %v274
    %v291 = vcvt.s32.f32 %v275
    %v292 = vcvt.s32.f32 %v276
    %293 = vset.pattern.permute.xlu0 0
    %294 = vperm.xlu0 %293, %v183
    %v295 = vpop.permute.xlu0 %294
    %296 = vset.pattern.permute.xlu0 0
    %297 = vperm.xlu0 %296, %v184
    %v298 = vpop.permute.xlu0 %297
    %299 = vset.pattern.permute.xlu0 0
    %300 = vperm.xlu0 %299, %v185
    %v301 = vpop.permute.xlu0 %300
    %vm302 = vcmp.eq.s32.totalorder %v187, %v295
    %vm303 = vcmp.eq.s32.totalorder %v187, %v298
    %vm304 = vcmp.eq.s32.totalorder %v187, %v301
    %v305 = vsel %vm302, 1, 0
    %v306 = vsel %vm303, 1, 0
    %v307 = vsel %vm304, 1, 0
    %v308 = vcvt.s32.f32 %v305
    %v309 = vcvt.s32.f32 %v306
    %v310 = vcvt.s32.f32 %v307
    %vm311 = vcmp.lt.s32.totalorder %v187, 4
    %v312 = vld [vmem:[#allocation7] sm:$0xff]
    %v313 = vld [vmem:[#allocation7 + $0x8] sm:$0xff]
    %v314 = vld [vmem:[#allocation7 + $0x10] sm:$0xff]
    %v315 = vld [vmem:[#allocation7 + $0x18] sm:$0xff]
    %v316 = vld [vmem:[#allocation7 + $0x20] sm:$0xff]
    %v317 = vld [vmem:[#allocation7 + $0x28] sm:$0xff]
    %v318 = vld [vmem:[#allocation7 + $0x30] sm:$0xff]
    %v319 = vld [vmem:[#allocation7 + $0x38] sm:$0xff]
    %v320 = vld [vmem:[#allocation7 + $0x40] sm:$0xff]
    %v321 = vld [vmem:[#allocation7 + $0x48] sm:$0xff]
    %v322 = vld [vmem:[#allocation7 + $0x50] sm:$0xff]
    %v323 = vld [vmem:[#allocation7 + $0x58] sm:$0xff]
    %v324 = vld [vmem:[#allocation7 + $0x60] sm:$0xff]
    %v325 = vld [vmem:[#allocation7 + $0x68] sm:$0xff]
    %v326 = vld [vmem:[#allocation7 + $0x70] sm:$0xff]
    %v327 = vld [vmem:[#allocation7 + $0x78] sm:$0xff]
    %v328 = vld [vmem:[#allocation8] sm:$0xff]
    %v329 = vld [vmem:[#allocation8 + $0x8] sm:$0xff]
    %v330 = vld [vmem:[#allocation8 + $0x10] sm:$0xff]
    %v331 = vld [vmem:[#allocation8 + $0x18] sm:$0xff]
    %v332 = vld [vmem:[#allocation8 + $0x20] sm:$0xff]
    %v333 = vld [vmem:[#allocation8 + $0x28] sm:$0xff]
    %v334 = vld [vmem:[#allocation8 + $0x30] sm:$0xff]
    %v335 = vld [vmem:[#allocation8 + $0x38] sm:$0xff]
    %v336 = vld [vmem:[#allocation8 + $0x40] sm:$0xff]
    %v337 = vld [vmem:[#allocation8 + $0x48] sm:$0xff]
    %v338 = vld [vmem:[#allocation8 + $0x50] sm:$0xff]
    %v339 = vld [vmem:[#allocation8 + $0x58] sm:$0xff]
    %v340 = vld [vmem:[#allocation8 + $0x60] sm:$0xff]
    %v341 = vld [vmem:[#allocation8 + $0x68] sm:$0xff]
    %v342 = vld [vmem:[#allocation8 + $0x70] sm:$0xff]
    %v343 = vld [vmem:[#allocation8 + $0x78] sm:$0xff]
    %v344 = vld [vmem:[#allocation13] sm:$0xff]
    %v345 = vld [vmem:[#allocation13 + $0x8] sm:$0xff]
    %v346 = vld [vmem:[#allocation13 + $0x10] sm:$0xff]
    %v347 = vld [vmem:[#allocation13 + $0x18] sm:$0xff]
    %v348 = vld [vmem:[#allocation13 + $0x20] sm:$0xff]
    %v349 = vld [vmem:[#allocation13 + $0x28] sm:$0xff]
    %v350 = vld [vmem:[#allocation13 + $0x30] sm:$0xff]
    %v351 = vld [vmem:[#allocation13 + $0x38] sm:$0xff]
    %v352 = vld [vmem:[#allocation13 + $0x40] sm:$0xff]
    %v353 = vld [vmem:[#allocation13 + $0x48] sm:$0xff]
    %v354 = vld [vmem:[#allocation13 + $0x50] sm:$0xff]
    %v355 = vld [vmem:[#allocation13 + $0x58] sm:$0xff]
    %v356 = vld [vmem:[#allocation13 + $0x60] sm:$0xff]
    %v357 = vld [vmem:[#allocation13 + $0x68] sm:$0xff]
    %v358 = vld [vmem:[#allocation13 + $0x70] sm:$0xff]
    %v359 = vld [vmem:[#allocation13 + $0x78] sm:$0xff]
    %v360 = vld [vmem:[#allocation13 + $0x80] sm:$0xff]
    %v361 = vld [vmem:[#allocation13 + $0x88] sm:$0xff]
    %v362 = vld [vmem:[#allocation13 + $0x90] sm:$0xff]
    %v363 = vld [vmem:[#allocation13 + $0x98] sm:$0xff]
    %v364 = vld [vmem:[#allocation13 + $0xa0] sm:$0xff]
    %v365 = vld [vmem:[#allocation13 + $0xa8] sm:$0xff]
    %v366 = vld [vmem:[#allocation13 + $0xb0] sm:$0xff]
    %v367 = vld [vmem:[#allocation13 + $0xb8] sm:$0xff]
    %v368 = vld [vmem:[#allocation13 + $0xc0] sm:$0xff]
    %v369 = vld [vmem:[#allocation13 + $0xc8] sm:$0xff]
    %v370 = vld [vmem:[#allocation13 + $0xd0] sm:$0xff]
    %v371 = vld [vmem:[#allocation13 + $0xd8] sm:$0xff]
    %v372 = vld [vmem:[#allocation13 + $0xe0] sm:$0xff]
    %v373 = vld [vmem:[#allocation13 + $0xe8] sm:$0xff]
    %v374 = vld [vmem:[#allocation13 + $0xf0] sm:$0xff]
    %v375 = vld [vmem:[#allocation13 + $0xf8] sm:$0xff]
    %376 = vmatpush.msra.mxu0 %v374
    %377 = vmatpush.msra.mxu0 %v372
    %378 = vmatpush.msra.mxu0 %v370
    %379 = vmatpush.msra.mxu0 %v368
    %380 = vmatpush.msra.mxu0 %v366
    %381 = vmatpush.msra.mxu0 %v364
    %382 = vmatpush.msra.mxu0 %v362
    %383 = vmatpush.msra.mxu0 %v360
    %384 = vmatpush.msra.mxu0 %v358
    %385 = vmatpush.msra.mxu0 %v356
    %386 = vmatpush.msra.mxu0 %v354
    %387 = vmatpush.msra.mxu0 %v352
    %388 = vmatpush.msra.mxu0 %v350
    %389 = vmatpush.msra.mxu0 %v348
    %390 = vmatpush.msra.mxu0 %v346
    %391 = vmatpush.msra.mxu0 %v344
    %392 = vmatmul.f32.gmra.mxu0 %v308
    %v393 = vpop.f32.mrf.mxu0
    %v394 = vadd.f32 0.0, %v393
    %395 = vmatmul.f32.gmra.mxu0 %v309
    %v396 = vpop.f32.mrf.mxu0
    %v397 = vadd.f32 0.0, %v396
    %398 = vmatmul.f32.gmra.mxu0 %v310
    %v399 = vpop.f32.mrf.mxu0
    %v400 = vadd.f32 0.0, %v399
    %401 = vdwg.mxu0
    %402 = vmatpush.msra.mxu0 %v375
    %403 = vmatpush.msra.mxu0 %v373
    %404 = vmatpush.msra.mxu0 %v371
    %405 = vmatpush.msra.mxu0 %v369
    %406 = vmatpush.msra.mxu0 %v367
    %407 = vmatpush.msra.mxu0 %v365
    %408 = vmatpush.msra.mxu0 %v363
    %409 = vmatpush.msra.mxu0 %v361
    %410 = vmatpush.msra.mxu0 %v359
    %411 = vmatpush.msra.mxu0 %v357
    %412 = vmatpush.msra.mxu0 %v355
    %413 = vmatpush.msra.mxu0 %v353
    %414 = vmatpush.msra.mxu0 %v351
    %415 = vmatpush.msra.mxu0 %v349
    %416 = vmatpush.msra.mxu0 %v347
    %417 = vmatpush.msra.mxu0 %v345
    %418 = vmatmul.f32.gmra.mxu0 %v308
    %v419 = vpop.f32.mrf.mxu0
    %v420 = vadd.f32 0.0, %v419
    %421 = vmatmul.f32.gmra.mxu0 %v309
    %v422 = vpop.f32.mrf.mxu0
    %v423 = vadd.f32 0.0, %v422
    %424 = vmatmul.f32.gmra.mxu0 %v310
    %v425 = vpop.f32.mrf.mxu0
    %v426 = vadd.f32 0.0, %v425
    %427 = vdwg.mxu0
    %vm428 = vcmp.gt.f32.partialorder %v394, 0.0
    %vm429 = vcmp.gt.f32.partialorder %v420, 0.0
    %vm430 = vcmp.gt.f32.partialorder %v397, 0.0
    %vm431 = vcmp.gt.f32.partialorder %v423, 0.0
    %vm432 = vcmp.gt.f32.partialorder %v400, 0.0
    %vm433 = vcmp.gt.f32.partialorder %v426, 0.0
    %v434 = vmul.f32 %v394, 0.2
    %v435 = vmul.f32 %v420, 0.2
    %v436 = vmul.f32 %v397, 0.2
    %v437 = vmul.f32 %v423, 0.2
    %v438 = vmul.f32 %v400, 0.2
    %v439 = vmul.f32 %v426, 0.2
    %v440 = vsel %vm428, %v394, %v434
    %v441 = vsel %vm429, %v420, %v435
    %v442 = vsel %vm430, %v397, %v436
    %v443 = vsel %vm431, %v423, %v437
    %v444 = vsel %vm432, %v400, %v438
    %v445 = vsel %vm433, %v426, %v439
    %v446 = vld [vmem:[#allocation2] sm:$0xff]
    %v447 = vld [vmem:[#allocation2 + $0x8] sm:$0xff]
    %v448 = vld [vmem:[#allocation2 + $0x10] sm:$0xff]
    %v449 = vld [vmem:[#allocation2 + $0x18] sm:$0xff]
    %v450 = vld [vmem:[#allocation2 + $0x20] sm:$0xff]
    %v451 = vld [vmem:[#allocation2 + $0x28] sm:$0xff]
    %v452 = vld [vmem:[#allocation2 + $0x30] sm:$0xff]
    %v453 = vld [vmem:[#allocation2 + $0x38] sm:$0xff]
    %v454 = vld [vmem:[#allocation2 + $0x40] sm:$0xff]
    %v455 = vld [vmem:[#allocation2 + $0x48] sm:$0xff]
    %v456 = vld [vmem:[#allocation2 + $0x50] sm:$0xff]
    %v457 = vld [vmem:[#allocation2 + $0x58] sm:$0xff]
    %v458 = vld [vmem:[#allocation2 + $0x60] sm:$0xff]
    %v459 = vld [vmem:[#allocation2 + $0x68] sm:$0xff]
    %v460 = vld [vmem:[#allocation2 + $0x70] sm:$0xff]
    %v461 = vld [vmem:[#allocation2 + $0x78] sm:$0xff]
    %v462 = vld [vmem:[#allocation5] sm:$0xff]
    %v463 = vld [vmem:[#allocation5 + $0x8] sm:$0xff]
    %v464 = vld [vmem:[#allocation5 + $0x10] sm:$0xff]
    %v465 = vld [vmem:[#allocation5 + $0x18] sm:$0xff]
    %v466 = vld [vmem:[#allocation5 + $0x20] sm:$0xff]
    %v467 = vld [vmem:[#allocation5 + $0x28] sm:$0xff]
    %v468 = vld [vmem:[#allocation5 + $0x30] sm:$0xff]
    %v469 = vld [vmem:[#allocation5 + $0x38] sm:$0xff]
    %v470 = vld [vmem:[#allocation5 + $0x40] sm:$0xff]
    %v471 = vld [vmem:[#allocation5 + $0x48] sm:$0xff]
    %v472 = vld [vmem:[#allocation5 + $0x50] sm:$0xff]
    %v473 = vld [vmem:[#allocation5 + $0x58] sm:$0xff]
    %v474 = vld [vmem:[#allocation5 + $0x60] sm:$0xff]
    %v475 = vld [vmem:[#allocation5 + $0x68] sm:$0xff]
    %v476 = vld [vmem:[#allocation5 + $0x70] sm:$0xff]
    %v477 = vld [vmem:[#allocation5 + $0x78] sm:$0xff]
    %v478 = vld [vmem:[%s5] sm:$0x1]
    %v480 = vperm.slane %v478, 0
    %482 = vmatpush.msra.mxu0 %v477
    %483 = vmatpush.msra.mxu0 %v476
    %484 = vmatpush.msra.mxu0 %v475
    %485 = vmatpush.msra.mxu0 %v474
    %486 = vmatpush.msra.mxu0 %v473
    %487 = vmatpush.msra.mxu0 %v472
    %488 = vmatpush.msra.mxu0 %v471
    %489 = vmatpush.msra.mxu0 %v470
    %490 = vmatpush.msra.mxu0 %v469
    %491 = vmatpush.msra.mxu0 %v468
    %492 = vmatpush.msra.mxu0 %v467
    %493 = vmatpush.msra.mxu0 %v466
    %494 = vmatpush.msra.mxu0 %v465
    %495 = vmatpush.msra.mxu0 %v464
    %496 = vmatpush.msra.mxu0 %v463
    %497 = vmatpush.msra.mxu0 %v462
    %498 = vmatmul.f32.gmra.mxu0 %v446
    %v499 = vpop.f32.mrf.mxu0
    %v500 = vadd.f32 %v480, %v499
    %501 = vmatmul.f32.gmra.mxu0 %v447
    %v502 = vpop.f32.mrf.mxu0
    %v503 = vadd.f32 %v480, %v502
    %504 = vmatmul.f32.gmra.mxu0 %v448
    %v505 = vpop.f32.mrf.mxu0
    %v506 = vadd.f32 %v480, %v505
    %507 = vmatmul.f32.gmra.mxu0 %v449
    %v508 = vpop.f32.mrf.mxu0
    %v509 = vadd.f32 %v480, %v508
    %510 = vmatmul.f32.gmra.mxu0 %v450
    %v511 = vpop.f32.mrf.mxu0
    %v512 = vadd.f32 %v480, %v511
    %513 = vmatmul.f32.gmra.mxu0 %v451
    %v514 = vpop.f32.mrf.mxu0
    %v515 = vadd.f32 %v480, %v514
    %516 = vmatmul.f32.gmra.mxu0 %v452
    %v517 = vpop.f32.mrf.mxu0
    %v518 = vadd.f32 %v480, %v517
    %519 = vmatmul.f32.gmra.mxu0 %v453
    %v520 = vpop.f32.mrf.mxu0
    %v521 = vadd.f32 %v480, %v520
    %522 = vmatmul.f32.gmra.mxu0 %v454
    %v523 = vpop.f32.mrf.mxu0
    %v524 = vadd.f32 %v480, %v523
    %525 = vmatmul.f32.gmra.mxu0 %v455
    %v526 = vpop.f32.mrf.mxu0
    %v527 = vadd.f32 %v480, %v526
    %528 = vmatmul.f32.gmra.mxu0 %v456
    %v529 = vpop.f32.mrf.mxu0
    %v530 = vadd.f32 %v480, %v529
    %531 = vmatmul.f32.gmra.mxu0 %v457
    %v532 = vpop.f32.mrf.mxu0
    %v533 = vadd.f32 %v480, %v532
    %534 = vmatmul.f32.gmra.mxu0 %v458
    %v535 = vpop.f32.mrf.mxu0
    %v536 = vadd.f32 %v480, %v535
    %537 = vmatmul.f32.gmra.mxu0 %v459
    %v538 = vpop.f32.mrf.mxu0
    %v539 = vadd.f32 %v480, %v538
    %540 = vmatmul.f32.gmra.mxu0 %v460
    %v541 = vpop.f32.mrf.mxu0
    %v542 = vadd.f32 %v480, %v541
    %543 = vmatmul.f32.gmra.mxu0 %v461
    %v544 = vpop.f32.mrf.mxu0
    %v545 = vadd.f32 %v480, %v544
    %546 = vdwg.mxu0
    %v547 = vmax.f32 %v500, 0.0
    %v548 = vmax.f32 %v503, 0.0
    %v549 = vmax.f32 %v506, 0.0
    %v550 = vmax.f32 %v509, 0.0
    %v551 = vmax.f32 %v512, 0.0
    %v552 = vmax.f32 %v515, 0.0
    %v553 = vmax.f32 %v518, 0.0
    %v554 = vmax.f32 %v521, 0.0
    %v555 = vmax.f32 %v524, 0.0
    %v556 = vmax.f32 %v527, 0.0
    %v557 = vmax.f32 %v530, 0.0
    %v558 = vmax.f32 %v533, 0.0
    %v559 = vmax.f32 %v536, 0.0
    %v560 = vmax.f32 %v539, 0.0
    %v561 = vmax.f32 %v542, 0.0
    %v562 = vmax.f32 %v545, 0.0
    %563 = vmatpush.msra.mxu0 %v562
    %564 = vmatpush.msra.mxu0 %v561
    %565 = vmatpush.msra.mxu0 %v560
    %566 = vmatpush.msra.mxu0 %v559
    %567 = vmatpush.msra.mxu0 %v558
    %568 = vmatpush.msra.mxu0 %v557
    %569 = vmatpush.msra.mxu0 %v556
    %570 = vmatpush.msra.mxu0 %v555
    %571 = vmatpush.msra.mxu0 %v554
    %572 = vmatpush.msra.mxu0 %v553
    %573 = vmatpush.msra.mxu0 %v552
    %574 = vmatpush.msra.mxu0 %v551
    %575 = vmatpush.msra.mxu0 %v550
    %576 = vmatpush.msra.mxu0 %v549
    %577 = vmatpush.msra.mxu0 %v548
    %578 = vmatpush.msra.mxu0 %v547
    %579 = vmatmul.f32.gmra.mxu0 %v218
    %v580 = vpop.f32.mrf.mxu0
    %v581 = vadd.f32 0.0, %v580
    %582 = vmatmul.f32.gmra.mxu0 %v219
    %v583 = vpop.f32.mrf.mxu0
    %v584 = vadd.f32 0.0, %v583
    %585 = vmatmul.f32.gmra.mxu0 %v220
    %v586 = vpop.f32.mrf.mxu0
    %v587 = vadd.f32 0.0, %v586
    %588 = vmatmul.f32.gmra.mxu0 %v221
    %v589 = vpop.f32.mrf.mxu0
    %v590 = vadd.f32 0.0, %v589
    %591 = vmatmul.f32.gmra.mxu0 %v222
    %v592 = vpop.f32.mrf.mxu0
    %v593 = vadd.f32 0.0, %v592
    %594 = vmatmul.f32.gmra.mxu0 %v223
    %v595 = vpop.f32.mrf.mxu0
    %v596 = vadd.f32 0.0, %v595
    %597 = vdwg.mxu0
    %v598 = vld [vmem:[#allocation11] sm:$0xff]
    %v599 = vld [vmem:[#allocation11 + $0x8] sm:$0xff]
    %v600 = vld [vmem:[#allocation11 + $0x10] sm:$0xff]
    %v601 = vld [vmem:[#allocation11 + $0x18] sm:$0xff]
    %v602 = vld [vmem:[#allocation11 + $0x20] sm:$0xff]
    %v603 = vld [vmem:[#allocation11 + $0x28] sm:$0xff]
    %v604 = vld [vmem:[#allocation11 + $0x30] sm:$0xff]
    %v605 = vld [vmem:[#allocation11 + $0x38] sm:$0xff]
    %v606 = vld [vmem:[#allocation11 + $0x40] sm:$0xff]
    %v607 = vld [vmem:[#allocation11 + $0x48] sm:$0xff]
    %v608 = vld [vmem:[#allocation11 + $0x50] sm:$0xff]
    %v609 = vld [vmem:[#allocation11 + $0x58] sm:$0xff]
    %v610 = vld [vmem:[#allocation11 + $0x60] sm:$0xff]
    %v611 = vld [vmem:[#allocation11 + $0x68] sm:$0xff]
    %v612 = vld [vmem:[#allocation11 + $0x70] sm:$0xff]
    %v613 = vld [vmem:[#allocation11 + $0x78] sm:$0xff]
    %v614 = vld [vmem:[#allocation11 + $0x80] sm:$0xff]
    %v615 = vld [vmem:[#allocation11 + $0x88] sm:$0xff]
    %v616 = vld [vmem:[#allocation11 + $0x90] sm:$0xff]
    %v617 = vld [vmem:[#allocation11 + $0x98] sm:$0xff]
    %v618 = vld [vmem:[#allocation11 + $0xa0] sm:$0xff]
    %v619 = vld [vmem:[#allocation11 + $0xa8] sm:$0xff]
    %v620 = vld [vmem:[#allocation11 + $0xb0] sm:$0xff]
    %v621 = vld [vmem:[#allocation11 + $0xb8] sm:$0xff]
    %v622 = vld [vmem:[#allocation11 + $0xc0] sm:$0xff]
    %v623 = vld [vmem:[#allocation11 + $0xc8] sm:$0xff]
    %v624 = vld [vmem:[#allocation11 + $0xd0] sm:$0xff]
    %v625 = vld [vmem:[#allocation11 + $0xd8] sm:$0xff]
    %v626 = vld [vmem:[#allocation11 + $0xe0] sm:$0xff]
    %v627 = vld [vmem:[#allocation11 + $0xe8] sm:$0xff]
    %v628 = vld [vmem:[#allocation11 + $0xf0] sm:$0xff]
    %v629 = vld [vmem:[#allocation11 + $0xf8] sm:$0xff]
    %v630 = vld [vmem:[%s10] sm:$0x3]
    %v632 = vperm.slane %v630, 0
    %v633 = vperm.slane %v630, 1
    %636 = vmatpush.msra.mxu0 %v628
    %637 = vmatpush.msra.mxu0 %v626
    %638 = vmatpush.msra.mxu0 %v624
    %639 = vmatpush.msra.mxu0 %v622
    %640 = vmatpush.msra.mxu0 %v620
    %641 = vmatpush.msra.mxu0 %v618
    %642 = vmatpush.msra.mxu0 %v616
    %643 = vmatpush.msra.mxu0 %v614
    %644 = vmatpush.msra.mxu0 %v612
    %645 = vmatpush.msra.mxu0 %v610
    %646 = vmatpush.msra.mxu0 %v608
    %647 = vmatpush.msra.mxu0 %v606
    %648 = vmatpush.msra.mxu0 %v604
    %649 = vmatpush.msra.mxu0 %v602
    %650 = vmatpush.msra.mxu0 %v600
    %651 = vmatpush.msra.mxu0 %v598
    %652 = vmatmul.f32.gmra.mxu0 %v590
    %v653 = vpop.f32.mrf.mxu0
    %v654 = vadd.f32 %v632, %v653
    %655 = vmatmul.f32.gmra.mxu0 %v593
    %v656 = vpop.f32.mrf.mxu0
    %v657 = vadd.f32 %v632, %v656
    %658 = vmatmul.f32.gmra.mxu0 %v596
    %v659 = vpop.f32.mrf.mxu0
    %v660 = vadd.f32 %v632, %v659
    %661 = vdwg.mxu0
    %662 = vmatpush.msra.mxu0 %v629
    %663 = vmatpush.msra.mxu0 %v627
    %664 = vmatpush.msra.mxu0 %v625
    %665 = vmatpush.msra.mxu0 %v623
    %666 = vmatpush.msra.mxu0 %v621
    %667 = vmatpush.msra.mxu0 %v619
    %668 = vmatpush.msra.mxu0 %v617
    %669 = vmatpush.msra.mxu0 %v615
    %670 = vmatpush.msra.mxu0 %v613
    %671 = vmatpush.msra.mxu0 %v611
    %672 = vmatpush.msra.mxu0 %v609
    %673 = vmatpush.msra.mxu0 %v607
    %674 = vmatpush.msra.mxu0 %v605
    %675 = vmatpush.msra.mxu0 %v603
    %676 = vmatpush.msra.mxu0 %v601
    %677 = vmatpush.msra.mxu0 %v599
    %678 = vmatmul.f32.gmra.mxu0 %v590
    %v679 = vpop.f32.mrf.mxu0
    %v680 = vadd.f32 %v633, %v679
    %681 = vmatmul.f32.gmra.mxu0 %v593
    %v682 = vpop.f32.mrf.mxu0
    %v683 = vadd.f32 %v633, %v682
    %684 = vmatmul.f32.gmra.mxu0 %v596
    %v685 = vpop.f32.mrf.mxu0
    %v686 = vadd.f32 %v633, %v685
    %687 = vdwg.mxu0
    %v688 = vld [vmem:[#allocation10] sm:$0xff]
    %v689 = vld [vmem:[#allocation10 + $0x8] sm:$0xff]
    %v690 = vld [vmem:[#allocation10 + $0x10] sm:$0xff]
    %v691 = vld [vmem:[#allocation10 + $0x18] sm:$0xff]
    %v692 = vld [vmem:[#allocation10 + $0x20] sm:$0xff]
    %v693 = vld [vmem:[#allocation10 + $0x28] sm:$0xff]
    %v694 = vld [vmem:[#allocation10 + $0x30] sm:$0xff]
    %v695 = vld [vmem:[#allocation10 + $0x38] sm:$0xff]
    %v696 = vld [vmem:[#allocation10 + $0x40] sm:$0xff]
    %v697 = vld [vmem:[#allocation10 + $0x48] sm:$0xff]
    %v698 = vld [vmem:[#allocation10 + $0x50] sm:$0xff]
    %v699 = vld [vmem:[#allocation10 + $0x58] sm:$0xff]
    %v700 = vld [vmem:[#allocation10 + $0x60] sm:$0xff]
    %v701 = vld [vmem:[#allocation10 + $0x68] sm:$0xff]
    %v702 = vld [vmem:[#allocation10 + $0x70] sm:$0xff]
    %v703 = vld [vmem:[#allocation10 + $0x78] sm:$0xff]
    %704 = vmatpush.msra.mxu0 %v703
    %705 = vmatpush.msra.mxu0 %v702
    %706 = vmatpush.msra.mxu0 %v701
    %707 = vmatpush.msra.mxu0 %v700
    %708 = vmatpush.msra.mxu0 %v699
    %709 = vmatpush.msra.mxu0 %v698
    %710 = vmatpush.msra.mxu0 %v697
    %711 = vmatpush.msra.mxu0 %v696
    %712 = vmatpush.msra.mxu0 %v695
    %713 = vmatpush.msra.mxu0 %v694
    %714 = vmatpush.msra.mxu0 %v693
    %715 = vmatpush.msra.mxu0 %v692
    %716 = vmatpush.msra.mxu0 %v691
    %717 = vmatpush.msra.mxu0 %v690
    %718 = vmatpush.msra.mxu0 %v689
    %719 = vmatpush.msra.mxu0 %v688
    %720 = vmatmul.f32.gmra.mxu0 %v581
    %v721 = vpop.f32.mrf.mxu0
    %v722 = vadd.f32 %v654, %v721
    %723 = vmatmul.f32.gmra.mxu0 %v584
    %v724 = vpop.f32.mrf.mxu0
    %v725 = vadd.f32 %v657, %v724
    %726 = vmatmul.f32.gmra.mxu0 %v587
    %v727 = vpop.f32.mrf.mxu0
    %v728 = vadd.f32 %v660, %v727
    %729 = vdwg.mxu0
    %vm730 = vcmp.gt.f32.partialorder %v722, 0.0
    %vm731 = vcmp.gt.f32.partialorder %v725, 0.0
    %vm732 = vcmp.gt.f32.partialorder %v728, 0.0
    %v733 = vmul.f32 %v722, 0.2
    %v734 = vmul.f32 %v725, 0.2
    %v735 = vmul.f32 %v728, 0.2
    %v736 = vsel %vm730, %v722, %v733
    %v737 = vsel %vm731, %v725, %v734
    %v738 = vsel %vm732, %v728, %v735
    %v739 = vld [vmem:[%s11] sm:$0x1]
    %v741 = vperm.slane %v739, 0
    %v743 = vmul.f32 %v736, %v741
    %v744 = vmul.f32 %v737, %v741
    %v745 = vmul.f32 %v738, %v741
    %746 = vmatpush.msra.mxu0 %v343
    %747 = vmatpush.msra.mxu0 %v342
    %748 = vmatpush.msra.mxu0 %v341
    %749 = vmatpush.msra.mxu0 %v340
    %750 = vmatpush.msra.mxu0 %v339
    %751 = vmatpush.msra.mxu0 %v338
    %752 = vmatpush.msra.mxu0 %v337
    %753 = vmatpush.msra.mxu0 %v336
    %754 = vmatpush.msra.mxu0 %v335
    %755 = vmatpush.msra.mxu0 %v334
    %756 = vmatpush.msra.mxu0 %v333
    %757 = vmatpush.msra.mxu0 %v332
    %758 = vmatpush.msra.mxu0 %v331
    %759 = vmatpush.msra.mxu0 %v330
    %760 = vmatpush.msra.mxu0 %v329
    %761 = vmatpush.msra.mxu0 %v328
    %762 = vmatmul.f32.gmra.mxu0 %v743
    %v763 = vpop.f32.mrf.mxu0
    %v764 = vadd.f32 %v440, %v763
    %765 = vmatmul.f32.gmra.mxu0 %v744
    %v766 = vpop.f32.mrf.mxu0
    %v767 = vadd.f32 %v442, %v766
    %768 = vmatmul.f32.gmra.mxu0 %v745
    %v769 = vpop.f32.mrf.mxu0
    %v770 = vadd.f32 %v444, %v769
    %771 = vdwg.mxu0
    %v772 = vsel %vm311, 1, 0
    %vm773 = vcmp.eq.s32.totalorder %v772, 1
    %v774 = vsel %vm773, %v764, -1e+30
    %v775 = vsel %vm773, %v767, -1e+30
    %v776 = vsel %vm773, %v770, -1e+30
    %777 = vmax.xlane.f32.xlu0 %v774
    %v778 = vpop.xlane.xlu0 %777
    %779 = vmax.xlane.f32.xlu0 %v775
    %v780 = vpop.xlane.xlu0 %779
    %781 = vmax.xlane.f32.xlu0 %v776
    %v782 = vpop.xlane.xlu0 %781
    %v783 = vsel %vm224, %v778, -1e+30
    %v784 = vsel %vm225, %v780, -1e+30
    %v785 = vsel %vm226, %v782, -1e+30
    %v786 = vmax.f32 %v783, %v784
    %v787 = vmax.f32 %v786, %v785
    %v788 = vrot.slane %v787, 4
    %v789 = vmax.f32 %v787, %v788
    %v790 = vrot.slane %v789, 2
    %v791 = vmax.f32 %v789, %v790
    %v792 = vrot.slane %v791, 1
    %v793 = vmax.f32 %v791, %v792
    %v794 = vmul.f32 %v218, %v793
    %v795 = vmul.f32 %v219, %v793
    %v796 = vmul.f32 %v220, %v793
    %797 = vadd.xlane.f32.xlu0 %v794
    %v798 = vpop.xlane.xlu0 %797
    %799 = vadd.xlane.f32.xlu0 %v795
    %v800 = vpop.xlane.xlu0 %799
    %801 = vadd.xlane.f32.xlu0 %v796
    %v802 = vpop.xlane.xlu0 %801
    %v803 = vsub.f32 %v764, %v798
    %v804 = vsub.f32 %v767, %v800
    %v805 = vsub.f32 %v770, %v802
    %v806 = vmul.f32 %v803, 1.442695
    %v807 = vpow.pop %v806
    %v808 = vmul.f32 %v804, 1.442695
    %v809 = vpow.pop %v808
    %v810 = vmul.f32 %v805, 1.442695
    %v811 = vpow.pop %v810
    %v812 = vsel %vm773, %v807, 0.0
    %v813 = vsel %vm773, %v809, 0.0
    %v814 = vsel %vm773, %v811, 0.0
    %vm815 = vcmask 195584
    %v817 = vsel %vm815, %v277, 0
    %v820 = vsel %vm815, %v278, 0
    %v823 = vsel %vm815, %v279, 0
    %v826 = vsel %vm815, %v280, 0
    %v829 = vsel %vm815, %v281, 0
    %v832 = vsel %vm815, %v282, 0
    %v835 = vsel %vm815, %v283, 0
    %v838 = vsel %vm815, %v284, 0
    %v841 = vsel %vm815, %v285, 0
    %v844 = vsel %vm815, %v286, 0
    %v847 = vsel %vm815, %v287, 0
    %v850 = vsel %vm815, %v288, 0
    %v853 = vsel %vm815, %v289, 0
    %v856 = vsel %vm815, %v290, 0
    %v859 = vsel %vm815, %v291, 0
    %v862 = vsel %vm815, %v292, 0
    %864 = vmatpush.msra.mxu0 0.0
    %865 = vmatpush.msra.mxu0 0.0
    %866 = vmatpush.msra.mxu0 0.0
    %867 = vmatpush.msra.mxu0 0.0
    %868 = vmatpush.msra.mxu0 0.0
    %869 = vmatpush.msra.mxu0 0.0
    %870 = vmatpush.msra.mxu0 0.0
    %871 = vmatpush.msra.mxu0 0.0
    %872 = vmatpush.msra.mxu0 0.0
    %873 = vmatpush.msra.mxu0 0.0
    %874 = vmatpush.msra.mxu0 0.0
    %875 = vmatpush.msra.mxu0 0.0
    %876 = vmatpush.msra.mxu0 0.0
    %877 = vmatpush.msra.mxu0 %v814
    %878 = vmatpush.msra.mxu0 %v813
    %879 = vmatpush.msra.mxu0 %v812
    %880 = vmatmul.f32.gmra.mxu0 %v817
    %v881 = vpop.f32.mrf.mxu0
    %v882 = vadd.f32 0.0, %v881
    %883 = vmatmul.f32.gmra.mxu0 %v820
    %v884 = vpop.f32.mrf.mxu0
    %v885 = vadd.f32 0.0, %v884
    %886 = vmatmul.f32.gmra.mxu0 %v823
    %v887 = vpop.f32.mrf.mxu0
    %v888 = vadd.f32 0.0, %v887
    %889 = vmatmul.f32.gmra.mxu0 %v826
    %v890 = vpop.f32.mrf.mxu0
    %v891 = vadd.f32 0.0, %v890
    %892 = vmatmul.f32.gmra.mxu0 %v829
    %v893 = vpop.f32.mrf.mxu0
    %v894 = vadd.f32 0.0, %v893
    %895 = vmatmul.f32.gmra.mxu0 %v832
    %v896 = vpop.f32.mrf.mxu0
    %v897 = vadd.f32 0.0, %v896
    %898 = vmatmul.f32.gmra.mxu0 %v835
    %v899 = vpop.f32.mrf.mxu0
    %v900 = vadd.f32 0.0, %v899
    %901 = vmatmul.f32.gmra.mxu0 %v838
    %v902 = vpop.f32.mrf.mxu0
    %v903 = vadd.f32 0.0, %v902
    %904 = vmatmul.f32.gmra.mxu0 %v841
    %v905 = vpop.f32.mrf.mxu0
    %v906 = vadd.f32 0.0, %v905
    %907 = vmatmul.f32.gmra.mxu0 %v844
    %v908 = vpop.f32.mrf.mxu0
    %v909 = vadd.f32 0.0, %v908
    %910 = vmatmul.f32.gmra.mxu0 %v847
    %v911 = vpop.f32.mrf.mxu0
    %v912 = vadd.f32 0.0, %v911
    %913 = vmatmul.f32.gmra.mxu0 %v850
    %v914 = vpop.f32.mrf.mxu0
    %v915 = vadd.f32 0.0, %v914
    %916 = vmatmul.f32.gmra.mxu0 %v853
    %v917 = vpop.f32.mrf.mxu0
    %v918 = vadd.f32 0.0, %v917
    %919 = vmatmul.f32.gmra.mxu0 %v856
    %v920 = vpop.f32.mrf.mxu0
    %v921 = vadd.f32 0.0, %v920
    %922 = vmatmul.f32.gmra.mxu0 %v859
    %v923 = vpop.f32.mrf.mxu0
    %v924 = vadd.f32 0.0, %v923
    %925 = vmatmul.f32.gmra.mxu0 %v862
    %v926 = vpop.f32.mrf.mxu0
    %v927 = vadd.f32 0.0, %v926
    %928 = vdwg.mxu0
    %929 = vmatpush.msra.mxu0 %v927
    %930 = vmatpush.msra.mxu0 %v924
    %931 = vmatpush.msra.mxu0 %v921
    %932 = vmatpush.msra.mxu0 %v918
    %933 = vmatpush.msra.mxu0 %v915
    %934 = vmatpush.msra.mxu0 %v912
    %935 = vmatpush.msra.mxu0 %v909
    %936 = vmatpush.msra.mxu0 %v906
    %937 = vmatpush.msra.mxu0 %v903
    %938 = vmatpush.msra.mxu0 %v900
    %939 = vmatpush.msra.mxu0 %v897
    %940 = vmatpush.msra.mxu0 %v894
    %941 = vmatpush.msra.mxu0 %v891
    %942 = vmatpush.msra.mxu0 %v888
    %943 = vmatpush.msra.mxu0 %v885
    %944 = vmatpush.msra.mxu0 %v882
    %945 = vmatmul.f32.gmra.mxu0 %v218
    %v946 = vpop.f32.mrf.mxu0
    %v947 = vadd.f32 1e-16, %v946
    %948 = vmatmul.f32.gmra.mxu0 %v219
    %v949 = vpop.f32.mrf.mxu0
    %v950 = vadd.f32 1e-16, %v949
    %951 = vmatmul.f32.gmra.mxu0 %v220
    %v952 = vpop.f32.mrf.mxu0
    %v953 = vadd.f32 1e-16, %v952
    %954 = vdwg.mxu0
    %v955 = vrcp.pop %v947
    %v956 = vmul.f32 %v947, %v955
    %v957 = vsub.f32 1.0, %v956
    %v958 = vmul.f32 %v955, %v957
    %v959 = vadd.f32 %v955, %v958
    %vm960 = vweird.f32 %v947
    %vm961 = vweird.f32 %v955
    %vm962 = vmor %vm960, %vm961
    %v963 = vsel %vm962, %v955, %v959
    %v964 = vand.u32 2147483647, %v947
    %vm965 = vcmp.eq.f32.partialorder %v964, 8.507059e+37
    %v966 = vand.u32 %v947, 2147483648
    %v967 = vor.u32 1.1754944e-38, %v966
    %v968 = vsel %vm965, %v967, %v963
    %v969 = vmul.f32 %v812, %v968
    %v970 = vrcp.pop %v950
    %v971 = vmul.f32 %v950, %v970
    %v972 = vsub.f32 1.0, %v971
    %v973 = vmul.f32 %v970, %v972
    %v974 = vadd.f32 %v970, %v973
    %vm975 = vweird.f32 %v950
    %vm976 = vweird.f32 %v970
    %vm977 = vmor %vm975, %vm976
    %v978 = vsel %vm977, %v970, %v974
    %v979 = vand.u32 2147483647, %v950
    %vm980 = vcmp.eq.f32.partialorder %v979, 8.507059e+37
    %v981 = vand.u32 %v950, 2147483648
    %v982 = vor.u32 1.1754944e-38, %v981
    %v983 = vsel %vm980, %v982, %v978
    %v984 = vmul.f32 %v813, %v983
    %v985 = vrcp.pop %v953
    %v986 = vmul.f32 %v953, %v985
    %v987 = vsub.f32 1.0, %v986
    %v988 = vmul.f32 %v985, %v987
    %v989 = vadd.f32 %v985, %v988
    %vm990 = vweird.f32 %v953
    %vm991 = vweird.f32 %v985
    %vm992 = vmor %vm990, %vm991
    %v993 = vsel %vm992, %v985, %v989
    %v994 = vand.u32 2147483647, %v953
    %vm995 = vcmp.eq.f32.partialorder %v994, 8.507059e+37
    %v996 = vand.u32 %v953, 2147483648
    %v997 = vor.u32 1.1754944e-38, %v996
    %v998 = vsel %vm995, %v997, %v993
    %v999 = vmul.f32 %v814, %v998
    %1000 = vmatpush.msra.mxu0 %v327
    %1001 = vmatpush.msra.mxu0 %v326
    %1002 = vmatpush.msra.mxu0 %v325
    %1003 = vmatpush.msra.mxu0 %v324
    %1004 = vmatpush.msra.mxu0 %v323
    %1005 = vmatpush.msra.mxu0 %v322
    %1006 = vmatpush.msra.mxu0 %v321
    %1007 = vmatpush.msra.mxu0 %v320
    %1008 = vmatpush.msra.mxu0 %v319
    %1009 = vmatpush.msra.mxu0 %v318
    %1010 = vmatpush.msra.mxu0 %v317
    %1011 = vmatpush.msra.mxu0 %v316
    %1012 = vmatpush.msra.mxu0 %v315
    %1013 = vmatpush.msra.mxu0 %v314
    %1014 = vmatpush.msra.mxu0 %v313
    %1015 = vmatpush.msra.mxu0 %v312
    %1016 = vmatmul.f32.gmra.mxu0 %v969
    %v1017 = vpop.f32.mrf.mxu0
    %v1018 = vadd.f32 0.0, %v1017
    %1019 = vmatmul.f32.gmra.mxu0 %v984
    %v1020 = vpop.f32.mrf.mxu0
    %v1021 = vadd.f32 0.0, %v1020
    %1022 = vmatmul.f32.gmra.mxu0 %v999
    %v1023 = vpop.f32.mrf.mxu0
    %v1024 = vadd.f32 0.0, %v1023
    %1025 = vdwg.mxu0
    %v1026 = vmul.f32 %v1018, %v680
    %v1027 = vmul.f32 %v1021, %v683
    %v1028 = vmul.f32 %v1024, %v686
    %1029 = vmatpush.msra.mxu0 0.0
    %1030 = vmatpush.msra.mxu0 0.0
    %1031 = vmatpush.msra.mxu0 0.0
    %1032 = vmatpush.msra.mxu0 0.0
    %1033 = vmatpush.msra.mxu0 0.0
    %1034 = vmatpush.msra.mxu0 0.0
    %1035 = vmatpush.msra.mxu0 0.0
    %1036 = vmatpush.msra.mxu0 0.0
    %1037 = vmatpush.msra.mxu0 0.0
    %1038 = vmatpush.msra.mxu0 0.0
    %1039 = vmatpush.msra.mxu0 0.0
    %1040 = vmatpush.msra.mxu0 0.0
    %1041 = vmatpush.msra.mxu0 0.0
    %1042 = vmatpush.msra.mxu0 %v1028
    %1043 = vmatpush.msra.mxu0 %v1027
    %1044 = vmatpush.msra.mxu0 %v1026
    %1045 = vmatmul.f32.gmra.mxu0 %v817
    %v1046 = vpop.f32.mrf.mxu0
    %v1047 = vadd.f32 0.0, %v1046
    %1048 = vmatmul.f32.gmra.mxu0 %v820
    %v1049 = vpop.f32.mrf.mxu0
    %v1050 = vadd.f32 0.0, %v1049
    %1051 = vmatmul.f32.gmra.mxu0 %v823
    %v1052 = vpop.f32.mrf.mxu0
    %v1053 = vadd.f32 0.0, %v1052
    %1054 = vmatmul.f32.gmra.mxu0 %v826
    %v1055 = vpop.f32.mrf.mxu0
    %v1056 = vadd.f32 0.0, %v1055
    %1057 = vmatmul.f32.gmra.mxu0 %v829
    %v1058 = vpop.f32.mrf.mxu0
    %v1059 = vadd.f32 0.0, %v1058
    %1060 = vmatmul.f32.gmra.mxu0 %v832
    %v1061 = vpop.f32.mrf.mxu0
    %v1062 = vadd.f32 0.0, %v1061
    %1063 = vmatmul.f32.gmra.mxu0 %v835
    %v1064 = vpop.f32.mrf.mxu0
    %v1065 = vadd.f32 0.0, %v1064
    %1066 = vmatmul.f32.gmra.mxu0 %v838
    %v1067 = vpop.f32.mrf.mxu0
    %v1068 = vadd.f32 0.0, %v1067
    %1069 = vmatmul.f32.gmra.mxu0 %v841
    %v1070 = vpop.f32.mrf.mxu0
    %v1071 = vadd.f32 0.0, %v1070
    %1072 = vmatmul.f32.gmra.mxu0 %v844
    %v1073 = vpop.f32.mrf.mxu0
    %v1074 = vadd.f32 0.0, %v1073
    %1075 = vmatmul.f32.gmra.mxu0 %v847
    %v1076 = vpop.f32.mrf.mxu0
    %v1077 = vadd.f32 0.0, %v1076
    %1078 = vmatmul.f32.gmra.mxu0 %v850
    %v1079 = vpop.f32.mrf.mxu0
    %v1080 = vadd.f32 0.0, %v1079
    %1081 = vmatmul.f32.gmra.mxu0 %v853
    %v1082 = vpop.f32.mrf.mxu0
    %v1083 = vadd.f32 0.0, %v1082
    %1084 = vmatmul.f32.gmra.mxu0 %v856
    %v1085 = vpop.f32.mrf.mxu0
    %v1086 = vadd.f32 0.0, %v1085
    %1087 = vmatmul.f32.gmra.mxu0 %v859
    %v1088 = vpop.f32.mrf.mxu0
    %v1089 = vadd.f32 0.0, %v1088
    %1090 = vmatmul.f32.gmra.mxu0 %v862
    %v1091 = vpop.f32.mrf.mxu0
    %v1092 = vadd.f32 0.0, %v1091
    %1093 = vdwg.mxu0
    %v1094 = vmax.f32 %v1047, 0.0
    %v1095 = vmax.f32 %v1050, 0.0
    %v1096 = vmax.f32 %v1053, 0.0
    %v1097 = vmax.f32 %v1056, 0.0
    %v1098 = vmax.f32 %v1059, 0.0
    %v1099 = vmax.f32 %v1062, 0.0
    %v1100 = vmax.f32 %v1065, 0.0
    %v1101 = vmax.f32 %v1068, 0.0
    %v1102 = vmax.f32 %v1071, 0.0
    %v1103 = vmax.f32 %v1074, 0.0
    %v1104 = vmax.f32 %v1077, 0.0
    %v1105 = vmax.f32 %v1080, 0.0
    %v1106 = vmax.f32 %v1083, 0.0
    %v1107 = vmax.f32 %v1086, 0.0
    %v1108 = vmax.f32 %v1089, 0.0
    %v1109 = vmax.f32 %v1092, 0.0
    %v1110 = vld [vmem:[#allocation14] sm:$0xff]
    %v1111 = vld [vmem:[#allocation14 + $0x8] sm:$0xff]
    %v1112 = vld [vmem:[#allocation14 + $0x10] sm:$0xff]
    %v1113 = vld [vmem:[#allocation14 + $0x18] sm:$0xff]
    %v1114 = vld [vmem:[#allocation14 + $0x20] sm:$0xff]
    %v1115 = vld [vmem:[#allocation14 + $0x28] sm:$0xff]
    %v1116 = vld [vmem:[#allocation14 + $0x30] sm:$0xff]
    %v1117 = vld [vmem:[#allocation14 + $0x38] sm:$0xff]
    %v1118 = vld [vmem:[#allocation14 + $0x40] sm:$0xff]
    %v1119 = vld [vmem:[#allocation14 + $0x48] sm:$0xff]
    %v1120 = vld [vmem:[#allocation14 + $0x50] sm:$0xff]
    %v1121 = vld [vmem:[#allocation14 + $0x58] sm:$0xff]
    %v1122 = vld [vmem:[#allocation14 + $0x60] sm:$0xff]
    %v1123 = vld [vmem:[#allocation14 + $0x68] sm:$0xff]
    %v1124 = vld [vmem:[#allocation14 + $0x70] sm:$0xff]
    %v1125 = vld [vmem:[#allocation14 + $0x78] sm:$0xff]
    %v1126 = vld [vmem:[%s14] sm:$0x1]
    %v1128 = vperm.slane %v1126, 0
    %1130 = vmatpush.msra.mxu0 %v1125
    %1131 = vmatpush.msra.mxu0 %v1124
    %1132 = vmatpush.msra.mxu0 %v1123
    %1133 = vmatpush.msra.mxu0 %v1122
    %1134 = vmatpush.msra.mxu0 %v1121
    %1135 = vmatpush.msra.mxu0 %v1120
    %1136 = vmatpush.msra.mxu0 %v1119
    %1137 = vmatpush.msra.mxu0 %v1118
    %1138 = vmatpush.msra.mxu0 %v1117
    %1139 = vmatpush.msra.mxu0 %v1116
    %1140 = vmatpush.msra.mxu0 %v1115
    %1141 = vmatpush.msra.mxu0 %v1114
    %1142 = vmatpush.msra.mxu0 %v1113
    %1143 = vmatpush.msra.mxu0 %v1112
    %1144 = vmatpush.msra.mxu0 %v1111
    %1145 = vmatpush.msra.mxu0 %v1110
    %1146 = vmatmul.f32.gmra.mxu0 %v547
    %v1147 = vpop.f32.mrf.mxu0
    %v1148 = vadd.f32 %v1128, %v1147
    %1149 = vmatmul.f32.gmra.mxu0 %v548
    %v1150 = vpop.f32.mrf.mxu0
    %v1151 = vadd.f32 %v1128, %v1150
    %1152 = vmatmul.f32.gmra.mxu0 %v549
    %v1153 = vpop.f32.mrf.mxu0
    %v1154 = vadd.f32 %v1128, %v1153
    %1155 = vmatmul.f32.gmra.mxu0 %v550
    %v1156 = vpop.f32.mrf.mxu0
    %v1157 = vadd.f32 %v1128, %v1156
    %1158 = vmatmul.f32.gmra.mxu0 %v551
    %v1159 = vpop.f32.mrf.mxu0
    %v1160 = vadd.f32 %v1128, %v1159
    %1161 = vmatmul.f32.gmra.mxu0 %v552
    %v1162 = vpop.f32.mrf.mxu0
    %v1163 = vadd.f32 %v1128, %v1162
    %1164 = vmatmul.f32.gmra.mxu0 %v553
    %v1165 = vpop.f32.mrf.mxu0
    %v1166 = vadd.f32 %v1128, %v1165
    %1167 = vmatmul.f32.gmra.mxu0 %v554
    %v1168 = vpop.f32.mrf.mxu0
    %v1169 = vadd.f32 %v1128, %v1168
    %1170 = vmatmul.f32.gmra.mxu0 %v555
    %v1171 = vpop.f32.mrf.mxu0
    %v1172 = vadd.f32 %v1128, %v1171
    %1173 = vmatmul.f32.gmra.mxu0 %v556
    %v1174 = vpop.f32.mrf.mxu0
    %v1175 = vadd.f32 %v1128, %v1174
    %1176 = vmatmul.f32.gmra.mxu0 %v557
    %v1177 = vpop.f32.mrf.mxu0
    %v1178 = vadd.f32 %v1128, %v1177
    %1179 = vmatmul.f32.gmra.mxu0 %v558
    %v1180 = vpop.f32.mrf.mxu0
    %v1181 = vadd.f32 %v1128, %v1180
    %1182 = vmatmul.f32.gmra.mxu0 %v559
    %v1183 = vpop.f32.mrf.mxu0
    %v1184 = vadd.f32 %v1128, %v1183
    %1185 = vmatmul.f32.gmra.mxu0 %v560
    %v1186 = vpop.f32.mrf.mxu0
    %v1187 = vadd.f32 %v1128, %v1186
    %1188 = vmatmul.f32.gmra.mxu0 %v561
    %v1189 = vpop.f32.mrf.mxu0
    %v1190 = vadd.f32 %v1128, %v1189
    %1191 = vmatmul.f32.gmra.mxu0 %v562
    %v1192 = vpop.f32.mrf.mxu0
    %v1193 = vadd.f32 %v1128, %v1192
    %1194 = vdwg.mxu0
    %v1195 = vmax.f32 %v1148, 0.0
    %v1196 = vmax.f32 %v1151, 0.0
    %v1197 = vmax.f32 %v1154, 0.0
    %v1198 = vmax.f32 %v1157, 0.0
    %v1199 = vmax.f32 %v1160, 0.0
    %v1200 = vmax.f32 %v1163, 0.0
    %v1201 = vmax.f32 %v1166, 0.0
    %v1202 = vmax.f32 %v1169, 0.0
    %v1203 = vmax.f32 %v1172, 0.0
    %v1204 = vmax.f32 %v1175, 0.0
    %v1205 = vmax.f32 %v1178, 0.0
    %v1206 = vmax.f32 %v1181, 0.0
    %v1207 = vmax.f32 %v1184, 0.0
    %v1208 = vmax.f32 %v1187, 0.0
    %v1209 = vmax.f32 %v1190, 0.0
    %v1210 = vmax.f32 %v1193, 0.0
    %v1211 = vadd.f32 %v1094, %v1195
    %v1212 = vadd.f32 %v1095, %v1196
    %v1213 = vadd.f32 %v1096, %v1197
    %v1214 = vadd.f32 %v1097, %v1198
    %v1215 = vadd.f32 %v1098, %v1199
    %v1216 = vadd.f32 %v1099, %v1200
    %v1217 = vadd.f32 %v1100, %v1201
    %v1218 = vadd.f32 %v1101, %v1202
    %v1219 = vadd.f32 %v1102, %v1203
    %v1220 = vadd.f32 %v1103, %v1204
    %v1221 = vadd.f32 %v1104, %v1205
    %v1222 = vadd.f32 %v1105, %v1206
    %v1223 = vadd.f32 %v1106, %v1207
    %v1224 = vadd.f32 %v1107, %v1208
    %v1225 = vadd.f32 %v1108, %v1209
    %v1226 = vadd.f32 %v1109, %v1210
    %1227 = vmatpush.msra.mxu0 %v1226
    %1228 = vmatpush.msra.mxu0 %v1225
    %1229 = vmatpush.msra.mxu0 %v1224
    %1230 = vmatpush.msra.mxu0 %v1223
    %1231 = vmatpush.msra.mxu0 %v1222
    %1232 = vmatpush.msra.mxu0 %v1221
    %1233 = vmatpush.msra.mxu0 %v1220
    %1234 = vmatpush.msra.mxu0 %v1219
    %1235 = vmatpush.msra.mxu0 %v1218
    %1236 = vmatpush.msra.mxu0 %v1217
    %1237 = vmatpush.msra.mxu0 %v1216
    %1238 = vmatpush.msra.mxu0 %v1215
    %1239 = vmatpush.msra.mxu0 %v1214
    %1240 = vmatpush.msra.mxu0 %v1213
    %1241 = vmatpush.msra.mxu0 %v1212
    %1242 = vmatpush.msra.mxu0 %v1211
    %1243 = vmatmul.f32.gmra.mxu0 %v218
    %v1244 = vpop.f32.mrf.mxu0
    %v1245 = vadd.f32 0.0, %v1244
    %1246 = vmatmul.f32.gmra.mxu0 %v219
    %v1247 = vpop.f32.mrf.mxu0
    %v1248 = vadd.f32 0.0, %v1247
    %1249 = vmatmul.f32.gmra.mxu0 %v220
    %v1250 = vpop.f32.mrf.mxu0
    %v1251 = vadd.f32 0.0, %v1250
    %1252 = vmatmul.f32.gmra.mxu0 %v221
    %v1253 = vpop.f32.mrf.mxu0
    %v1254 = vadd.f32 0.0, %v1253
    %1255 = vmatmul.f32.gmra.mxu0 %v222
    %v1256 = vpop.f32.mrf.mxu0
    %v1257 = vadd.f32 0.0, %v1256
    %1258 = vmatmul.f32.gmra.mxu0 %v223
    %v1259 = vpop.f32.mrf.mxu0
    %v1260 = vadd.f32 0.0, %v1259
    %1261 = vdwg.mxu0
    %s1262 = scalar_lea.vmem [#allocation11], 256
    %v1263 = vld [vmem:[%s1262] sm:$0xff]
    %v1264 = vld [vmem:[%s1262 + $0x8] sm:$0xff]
    %v1265 = vld [vmem:[%s1262 + $0x10] sm:$0xff]
    %v1266 = vld [vmem:[%s1262 + $0x18] sm:$0xff]
    %v1267 = vld [vmem:[%s1262 + $0x20] sm:$0xff]
    %v1268 = vld [vmem:[%s1262 + $0x28] sm:$0xff]
    %v1269 = vld [vmem:[%s1262 + $0x30] sm:$0xff]
    %v1270 = vld [vmem:[%s1262 + $0x38] sm:$0xff]
    %v1271 = vld [vmem:[%s1262 + $0x40] sm:$0xff]
    %v1272 = vld [vmem:[%s1262 + $0x48] sm:$0xff]
    %v1273 = vld [vmem:[%s1262 + $0x50] sm:$0xff]
    %v1274 = vld [vmem:[%s1262 + $0x58] sm:$0xff]
    %v1275 = vld [vmem:[%s1262 + $0x60] sm:$0xff]
    %v1276 = vld [vmem:[%s1262 + $0x68] sm:$0xff]
    %v1277 = vld [vmem:[%s1262 + $0x70] sm:$0xff]
    %v1278 = vld [vmem:[%s1262 + $0x78] sm:$0xff]
    %v1279 = vld [vmem:[%s1262 + $0x80] sm:$0xff]
    %v1280 = vld [vmem:[%s1262 + $0x88] sm:$0xff]
    %v1281 = vld [vmem:[%s1262 + $0x90] sm:$0xff]
    %v1282 = vld [vmem:[%s1262 + $0x98] sm:$0xff]
    %v1283 = vld [vmem:[%s1262 + $0xa0] sm:$0xff]
    %v1284 = vld [vmem:[%s1262 + $0xa8] sm:$0xff]
    %v1285 = vld [vmem:[%s1262 + $0xb0] sm:$0xff]
    %v1286 = vld [vmem:[%s1262 + $0xb8] sm:$0xff]
    %v1287 = vld [vmem:[%s1262 + $0xc0] sm:$0xff]
    %v1288 = vld [vmem:[%s1262 + $0xc8] sm:$0xff]
    %v1289 = vld [vmem:[%s1262 + $0xd0] sm:$0xff]
    %v1290 = vld [vmem:[%s1262 + $0xd8] sm:$0xff]
    %v1291 = vld [vmem:[%s1262 + $0xe0] sm:$0xff]
    %v1292 = vld [vmem:[%s1262 + $0xe8] sm:$0xff]
    %v1293 = vld [vmem:[%s1262 + $0xf0] sm:$0xff]
    %v1294 = vld [vmem:[%s1262 + $0xf8] sm:$0xff]
    %s1295 = scalar_lea.vmem %s10, 2
    %v1296 = vld [vmem:[%s1295] sm:$0x3]
    %v1298 = vperm.slane %v1296, 0
    %v1299 = vperm.slane %v1296, 1
    %1302 = vmatpush.msra.mxu0 %v1293
    %1303 = vmatpush.msra.mxu0 %v1291
    %1304 = vmatpush.msra.mxu0 %v1289
    %1305 = vmatpush.msra.mxu0 %v1287
    %1306 = vmatpush.msra.mxu0 %v1285
    %1307 = vmatpush.msra.mxu0 %v1283
    %1308 = vmatpush.msra.mxu0 %v1281
    %1309 = vmatpush.msra.mxu0 %v1279
    %1310 = vmatpush.msra.mxu0 %v1277
    %1311 = vmatpush.msra.mxu0 %v1275
    %1312 = vmatpush.msra.mxu0 %v1273
    %1313 = vmatpush.msra.mxu0 %v1271
    %1314 = vmatpush.msra.mxu0 %v1269
    %1315 = vmatpush.msra.mxu0 %v1267
    %1316 = vmatpush.msra.mxu0 %v1265
    %1317 = vmatpush.msra.mxu0 %v1263
    %1318 = vmatmul.f32.gmra.mxu0 %v1254
    %v1319 = vpop.f32.mrf.mxu0
    %v1320 = vadd.f32 %v1298, %v1319
    %1321 = vmatmul.f32.gmra.mxu0 %v1257
    %v1322 = vpop.f32.mrf.mxu0
    %v1323 = vadd.f32 %v1298, %v1322
    %1324 = vmatmul.f32.gmra.mxu0 %v1260
    %v1325 = vpop.f32.mrf.mxu0
    %v1326 = vadd.f32 %v1298, %v1325
    %1327 = vdwg.mxu0
    %1328 = vmatpush.msra.mxu0 %v1294
    %1329 = vmatpush.msra.mxu0 %v1292
    %1330 = vmatpush.msra.mxu0 %v1290
    %1331 = vmatpush.msra.mxu0 %v1288
    %1332 = vmatpush.msra.mxu0 %v1286
    %1333 = vmatpush.msra.mxu0 %v1284
    %1334 = vmatpush.msra.mxu0 %v1282
    %1335 = vmatpush.msra.mxu0 %v1280
    %1336 = vmatpush.msra.mxu0 %v1278
    %1337 = vmatpush.msra.mxu0 %v1276
    %1338 = vmatpush.msra.mxu0 %v1274
    %1339 = vmatpush.msra.mxu0 %v1272
    %1340 = vmatpush.msra.mxu0 %v1270
    %1341 = vmatpush.msra.mxu0 %v1268
    %1342 = vmatpush.msra.mxu0 %v1266
    %1343 = vmatpush.msra.mxu0 %v1264
    %1344 = vmatmul.f32.gmra.mxu0 %v1254
    %v1345 = vpop.f32.mrf.mxu0
    %v1346 = vadd.f32 %v1299, %v1345
    %1347 = vmatmul.f32.gmra.mxu0 %v1257
    %v1348 = vpop.f32.mrf.mxu0
    %v1349 = vadd.f32 %v1299, %v1348
    %1350 = vmatmul.f32.gmra.mxu0 %v1260
    %v1351 = vpop.f32.mrf.mxu0
    %v1352 = vadd.f32 %v1299, %v1351
    %1353 = vdwg.mxu0
    %s1354 = scalar_lea.vmem [#allocation10], 128
    %v1355 = vld [vmem:[%s1354] sm:$0xff]
    %v1356 = vld [vmem:[%s1354 + $0x8] sm:$0xff]
    %v1357 = vld [vmem:[%s1354 + $0x10] sm:$0xff]
    %v1358 = vld [vmem:[%s1354 + $0x18] sm:$0xff]
    %v1359 = vld [vmem:[%s1354 + $0x20] sm:$0xff]
    %v1360 = vld [vmem:[%s1354 + $0x28] sm:$0xff]
    %v1361 = vld [vmem:[%s1354 + $0x30] sm:$0xff]
    %v1362 = vld [vmem:[%s1354 + $0x38] sm:$0xff]
    %v1363 = vld [vmem:[%s1354 + $0x40] sm:$0xff]
    %v1364 = vld [vmem:[%s1354 + $0x48] sm:$0xff]
    %v1365 = vld [vmem:[%s1354 + $0x50] sm:$0xff]
    %v1366 = vld [vmem:[%s1354 + $0x58] sm:$0xff]
    %v1367 = vld [vmem:[%s1354 + $0x60] sm:$0xff]
    %v1368 = vld [vmem:[%s1354 + $0x68] sm:$0xff]
    %v1369 = vld [vmem:[%s1354 + $0x70] sm:$0xff]
    %v1370 = vld [vmem:[%s1354 + $0x78] sm:$0xff]
    %1371 = vmatpush.msra.mxu0 %v1370
    %1372 = vmatpush.msra.mxu0 %v1369
    %1373 = vmatpush.msra.mxu0 %v1368
    %1374 = vmatpush.msra.mxu0 %v1367
    %1375 = vmatpush.msra.mxu0 %v1366
    %1376 = vmatpush.msra.mxu0 %v1365
    %1377 = vmatpush.msra.mxu0 %v1364
    %1378 = vmatpush.msra.mxu0 %v1363
    %1379 = vmatpush.msra.mxu0 %v1362
    %1380 = vmatpush.msra.mxu0 %v1361
    %1381 = vmatpush.msra.mxu0 %v1360
    %1382 = vmatpush.msra.mxu0 %v1359
    %1383 = vmatpush.msra.mxu0 %v1358
    %1384 = vmatpush.msra.mxu0 %v1357
    %1385 = vmatpush.msra.mxu0 %v1356
    %1386 = vmatpush.msra.mxu0 %v1355
    %1387 = vmatmul.f32.gmra.mxu0 %v1245
    %v1388 = vpop.f32.mrf.mxu0
    %v1389 = vadd.f32 %v1320, %v1388
    %1390 = vmatmul.f32.gmra.mxu0 %v1248
    %v1391 = vpop.f32.mrf.mxu0
    %v1392 = vadd.f32 %v1323, %v1391
    %1393 = vmatmul.f32.gmra.mxu0 %v1251
    %v1394 = vpop.f32.mrf.mxu0
    %v1395 = vadd.f32 %v1326, %v1394
    %1396 = vdwg.mxu0
    %vm1397 = vcmp.gt.f32.partialorder %v1389, 0.0
    %vm1398 = vcmp.gt.f32.partialorder %v1392, 0.0
    %vm1399 = vcmp.gt.f32.partialorder %v1395, 0.0
    %v1400 = vmul.f32 %v1389, 0.2
    %v1401 = vmul.f32 %v1392, 0.2
    %v1402 = vmul.f32 %v1395, 0.2
    %v1403 = vsel %vm1397, %v1389, %v1400
    %v1404 = vsel %vm1398, %v1392, %v1401
    %v1405 = vsel %vm1399, %v1395, %v1402
    %s1406 = scalar_lea.vmem %s11, 1
    %v1407 = vld [vmem:[%s1406] sm:$0x1]
    %v1409 = vperm.slane %v1407, 0
    %v1411 = vmul.f32 %v1403, %v1409
    %v1412 = vmul.f32 %v1404, %v1409
    %v1413 = vmul.f32 %v1405, %v1409
    %1414 = vmatpush.msra.mxu0 %v343
    %1415 = vmatpush.msra.mxu0 %v342
    %1416 = vmatpush.msra.mxu0 %v341
    %1417 = vmatpush.msra.mxu0 %v340
    %1418 = vmatpush.msra.mxu0 %v339
    %1419 = vmatpush.msra.mxu0 %v338
    %1420 = vmatpush.msra.mxu0 %v337
    %1421 = vmatpush.msra.mxu0 %v336
    %1422 = vmatpush.msra.mxu0 %v335
    %1423 = vmatpush.msra.mxu0 %v334
    %1424 = vmatpush.msra.mxu0 %v333
    %1425 = vmatpush.msra.mxu0 %v332
    %1426 = vmatpush.msra.mxu0 %v331
    %1427 = vmatpush.msra.mxu0 %v330
    %1428 = vmatpush.msra.mxu0 %v329
    %1429 = vmatpush.msra.mxu0 %v328
    %1430 = vmatmul.f32.gmra.mxu0 %v1411
    %v1431 = vpop.f32.mrf.mxu0
    %v1432 = vadd.f32 %v441, %v1431
    %1433 = vmatmul.f32.gmra.mxu0 %v1412
    %v1434 = vpop.f32.mrf.mxu0
    %v1435 = vadd.f32 %v443, %v1434
    %1436 = vmatmul.f32.gmra.mxu0 %v1413
    %v1437 = vpop.f32.mrf.mxu0
    %v1438 = vadd.f32 %v445, %v1437
    %1439 = vdwg.mxu0
    %v1440 = vsel %vm773, %v1432, -1e+30
    %v1441 = vsel %vm773, %v1435, -1e+30
    %v1442 = vsel %vm773, %v1438, -1e+30
    %1443 = vmax.xlane.f32.xlu0 %v1440
    %v1444 = vpop.xlane.xlu0 %1443
    %1445 = vmax.xlane.f32.xlu0 %v1441
    %v1446 = vpop.xlane.xlu0 %1445
    %1447 = vmax.xlane.f32.xlu0 %v1442
    %v1448 = vpop.xlane.xlu0 %1447
    %v1449 = vsel %vm224, %v1444, -1e+30
    %v1450 = vsel %vm225, %v1446, -1e+30
    %v1451 = vsel %vm226, %v1448, -1e+30
    %v1452 = vmax.f32 %v1449, %v1450
    %v1453 = vmax.f32 %v1452, %v1451
    %v1454 = vrot.slane %v1453, 4
    %v1455 = vmax.f32 %v1453, %v1454
    %v1456 = vrot.slane %v1455, 2
    %v1457 = vmax.f32 %v1455, %v1456
    %v1458 = vrot.slane %v1457, 1
    %v1459 = vmax.f32 %v1457, %v1458
    %v1460 = vmul.f32 %v218, %v1459
    %v1461 = vmul.f32 %v219, %v1459
    %v1462 = vmul.f32 %v220, %v1459
    %1463 = vadd.xlane.f32.xlu0 %v1460
    %v1464 = vpop.xlane.xlu0 %1463
    %1465 = vadd.xlane.f32.xlu0 %v1461
    %v1466 = vpop.xlane.xlu0 %1465
    %1467 = vadd.xlane.f32.xlu0 %v1462
    %v1468 = vpop.xlane.xlu0 %1467
    %v1469 = vsub.f32 %v1432, %v1464
    %v1470 = vsub.f32 %v1435, %v1466
    %v1471 = vsub.f32 %v1438, %v1468
    %v1472 = vmul.f32 %v1469, 1.442695
    %v1473 = vpow.pop %v1472
    %v1474 = vmul.f32 %v1470, 1.442695
    %v1475 = vpow.pop %v1474
    %v1476 = vmul.f32 %v1471, 1.442695
    %v1477 = vpow.pop %v1476
    %v1478 = vsel %vm773, %v1473, 0.0
    %v1479 = vsel %vm773, %v1475, 0.0
    %v1480 = vsel %vm773, %v1477, 0.0
    %1481 = vmatpush.msra.mxu0 0.0
    %1482 = vmatpush.msra.mxu0 0.0
    %1483 = vmatpush.msra.mxu0 0.0
    %1484 = vmatpush.msra.mxu0 0.0
    %1485 = vmatpush.msra.mxu0 0.0
    %1486 = vmatpush.msra.mxu0 0.0
    %1487 = vmatpush.msra.mxu0 0.0
    %1488 = vmatpush.msra.mxu0 0.0
    %1489 = vmatpush.msra.mxu0 0.0
    %1490 = vmatpush.msra.mxu0 0.0
    %1491 = vmatpush.msra.mxu0 0.0
    %1492 = vmatpush.msra.mxu0 0.0
    %1493 = vmatpush.msra.mxu0 0.0
    %1494 = vmatpush.msra.mxu0 %v1480
    %1495 = vmatpush.msra.mxu0 %v1479
    %1496 = vmatpush.msra.mxu0 %v1478
    %1497 = vmatmul.f32.gmra.mxu0 %v817
    %v1498 = vpop.f32.mrf.mxu0
    %v1499 = vadd.f32 0.0, %v1498
    %1500 = vmatmul.f32.gmra.mxu0 %v820
    %v1501 = vpop.f32.mrf.mxu0
    %v1502 = vadd.f32 0.0, %v1501
    %1503 = vmatmul.f32.gmra.mxu0 %v823
    %v1504 = vpop.f32.mrf.mxu0
    %v1505 = vadd.f32 0.0, %v1504
    %1506 = vmatmul.f32.gmra.mxu0 %v826
    %v1507 = vpop.f32.mrf.mxu0
    %v1508 = vadd.f32 0.0, %v1507
    %1509 = vmatmul.f32.gmra.mxu0 %v829
    %v1510 = vpop.f32.mrf.mxu0
    %v1511 = vadd.f32 0.0, %v1510
    %1512 = vmatmul.f32.gmra.mxu0 %v832
    %v1513 = vpop.f32.mrf.mxu0
    %v1514 = vadd.f32 0.0, %v1513
    %1515 = vmatmul.f32.gmra.mxu0 %v835
    %v1516 = vpop.f32.mrf.mxu0
    %v1517 = vadd.f32 0.0, %v1516
    %1518 = vmatmul.f32.gmra.mxu0 %v838
    %v1519 = vpop.f32.mrf.mxu0
    %v1520 = vadd.f32 0.0, %v1519
    %1521 = vmatmul.f32.gmra.mxu0 %v841
    %v1522 = vpop.f32.mrf.mxu0
    %v1523 = vadd.f32 0.0, %v1522
    %1524 = vmatmul.f32.gmra.mxu0 %v844
    %v1525 = vpop.f32.mrf.mxu0
    %v1526 = vadd.f32 0.0, %v1525
    %1527 = vmatmul.f32.gmra.mxu0 %v847
    %v1528 = vpop.f32.mrf.mxu0
    %v1529 = vadd.f32 0.0, %v1528
    %1530 = vmatmul.f32.gmra.mxu0 %v850
    %v1531 = vpop.f32.mrf.mxu0
    %v1532 = vadd.f32 0.0, %v1531
    %1533 = vmatmul.f32.gmra.mxu0 %v853
    %v1534 = vpop.f32.mrf.mxu0
    %v1535 = vadd.f32 0.0, %v1534
    %1536 = vmatmul.f32.gmra.mxu0 %v856
    %v1537 = vpop.f32.mrf.mxu0
    %v1538 = vadd.f32 0.0, %v1537
    %1539 = vmatmul.f32.gmra.mxu0 %v859
    %v1540 = vpop.f32.mrf.mxu0
    %v1541 = vadd.f32 0.0, %v1540
    %1542 = vmatmul.f32.gmra.mxu0 %v862
    %v1543 = vpop.f32.mrf.mxu0
    %v1544 = vadd.f32 0.0, %v1543
    %1545 = vdwg.mxu0
    %1546 = vmatpush.msra.mxu0 %v1544
    %1547 = vmatpush.msra.mxu0 %v1541
    %1548 = vmatpush.msra.mxu0 %v1538
    %1549 = vmatpush.msra.mxu0 %v1535
    %1550 = vmatpush.msra.mxu0 %v1532
    %1551 = vmatpush.msra.mxu0 %v1529
    %1552 = vmatpush.msra.mxu0 %v1526
    %1553 = vmatpush.msra.mxu0 %v1523
    %1554 = vmatpush.msra.mxu0 %v1520
    %1555 = vmatpush.msra.mxu0 %v1517
    %1556 = vmatpush.msra.mxu0 %v1514
    %1557 = vmatpush.msra.mxu0 %v1511
    %1558 = vmatpush.msra.mxu0 %v1508
    %1559 = vmatpush.msra.mxu0 %v1505
    %1560 = vmatpush.msra.mxu0 %v1502
    %1561 = vmatpush.msra.mxu0 %v1499
    %1562 = vmatmul.f32.gmra.mxu0 %v218
    %v1563 = vpop.f32.mrf.mxu0
    %v1564 = vadd.f32 1e-16, %v1563
    %1565 = vmatmul.f32.gmra.mxu0 %v219
    %v1566 = vpop.f32.mrf.mxu0
    %v1567 = vadd.f32 1e-16, %v1566
    %1568 = vmatmul.f32.gmra.mxu0 %v220
    %v1569 = vpop.f32.mrf.mxu0
    %v1570 = vadd.f32 1e-16, %v1569
    %1571 = vdwg.mxu0
    %v1572 = vrcp.pop %v1564
    %v1573 = vmul.f32 %v1564, %v1572
    %v1574 = vsub.f32 1.0, %v1573
    %v1575 = vmul.f32 %v1572, %v1574
    %v1576 = vadd.f32 %v1572, %v1575
    %vm1577 = vweird.f32 %v1564
    %vm1578 = vweird.f32 %v1572
    %vm1579 = vmor %vm1577, %vm1578
    %v1580 = vsel %vm1579, %v1572, %v1576
    %v1581 = vand.u32 2147483647, %v1564
    %vm1582 = vcmp.eq.f32.partialorder %v1581, 8.507059e+37
    %v1583 = vand.u32 %v1564, 2147483648
    %v1584 = vor.u32 1.1754944e-38, %v1583
    %v1585 = vsel %vm1582, %v1584, %v1580
    %v1586 = vmul.f32 %v1478, %v1585
    %v1587 = vrcp.pop %v1567
    %v1588 = vmul.f32 %v1567, %v1587
    %v1589 = vsub.f32 1.0, %v1588
    %v1590 = vmul.f32 %v1587, %v1589
    %v1591 = vadd.f32 %v1587, %v1590
    %vm1592 = vweird.f32 %v1567
    %vm1593 = vweird.f32 %v1587
    %vm1594 = vmor %vm1592, %vm1593
    %v1595 = vsel %vm1594, %v1587, %v1591
    %v1596 = vand.u32 2147483647, %v1567
    %vm1597 = vcmp.eq.f32.partialorder %v1596, 8.507059e+37
    %v1598 = vand.u32 %v1567, 2147483648
    %v1599 = vor.u32 1.1754944e-38, %v1598
    %v1600 = vsel %vm1597, %v1599, %v1595
    %v1601 = vmul.f32 %v1479, %v1600
    %v1602 = vrcp.pop %v1570
    %v1603 = vmul.f32 %v1570, %v1602
    %v1604 = vsub.f32 1.0, %v1603
    %v1605 = vmul.f32 %v1602, %v1604
    %v1606 = vadd.f32 %v1602, %v1605
    %vm1607 = vweird.f32 %v1570
    %vm1608 = vweird.f32 %v1602
    %vm1609 = vmor %vm1607, %vm1608
    %v1610 = vsel %vm1609, %v1602, %v1606
    %v1611 = vand.u32 2147483647, %v1570
    %vm1612 = vcmp.eq.f32.partialorder %v1611, 8.507059e+37
    %v1613 = vand.u32 %v1570, 2147483648
    %v1614 = vor.u32 1.1754944e-38, %v1613
    %v1615 = vsel %vm1612, %v1614, %v1610
    %v1616 = vmul.f32 %v1480, %v1615
    %1617 = vmatpush.msra.mxu0 %v327
    %1618 = vmatpush.msra.mxu0 %v326
    %1619 = vmatpush.msra.mxu0 %v325
    %1620 = vmatpush.msra.mxu0 %v324
    %1621 = vmatpush.msra.mxu0 %v323
    %1622 = vmatpush.msra.mxu0 %v322
    %1623 = vmatpush.msra.mxu0 %v321
    %1624 = vmatpush.msra.mxu0 %v320
    %1625 = vmatpush.msra.mxu0 %v319
    %1626 = vmatpush.msra.mxu0 %v318
    %1627 = vmatpush.msra.mxu0 %v317
    %1628 = vmatpush.msra.mxu0 %v316
    %1629 = vmatpush.msra.mxu0 %v315
    %1630 = vmatpush.msra.mxu0 %v314
    %1631 = vmatpush.msra.mxu0 %v313
    %1632 = vmatpush.msra.mxu0 %v312
    %1633 = vmatmul.f32.gmra.mxu0 %v1586
    %v1634 = vpop.f32.mrf.mxu0
    %v1635 = vadd.f32 0.0, %v1634
    %1636 = vmatmul.f32.gmra.mxu0 %v1601
    %v1637 = vpop.f32.mrf.mxu0
    %v1638 = vadd.f32 0.0, %v1637
    %1639 = vmatmul.f32.gmra.mxu0 %v1616
    %v1640 = vpop.f32.mrf.mxu0
    %v1641 = vadd.f32 0.0, %v1640
    %1642 = vdwg.mxu0
    %v1643 = vmul.f32 %v1635, %v1346
    %v1644 = vmul.f32 %v1638, %v1349
    %v1645 = vmul.f32 %v1641, %v1352
    %1646 = vmatpush.msra.mxu0 0.0
    %1647 = vmatpush.msra.mxu0 0.0
    %1648 = vmatpush.msra.mxu0 0.0
    %1649 = vmatpush.msra.mxu0 0.0
    %1650 = vmatpush.msra.mxu0 0.0
    %1651 = vmatpush.msra.mxu0 0.0
    %1652 = vmatpush.msra.mxu0 0.0
    %1653 = vmatpush.msra.mxu0 0.0
    %1654 = vmatpush.msra.mxu0 0.0
    %1655 = vmatpush.msra.mxu0 0.0
    %1656 = vmatpush.msra.mxu0 0.0
    %1657 = vmatpush.msra.mxu0 0.0
    %1658 = vmatpush.msra.mxu0 0.0
    %1659 = vmatpush.msra.mxu0 %v1645
    %1660 = vmatpush.msra.mxu0 %v1644
    %1661 = vmatpush.msra.mxu0 %v1643
    %1662 = vmatmul.f32.gmra.mxu0 %v817
    %v1663 = vpop.f32.mrf.mxu0
    %v1664 = vadd.f32 0.0, %v1663
    %1665 = vmatmul.f32.gmra.mxu0 %v820
    %v1666 = vpop.f32.mrf.mxu0
    %v1667 = vadd.f32 0.0, %v1666
    %1668 = vmatmul.f32.gmra.mxu0 %v823
    %v1669 = vpop.f32.mrf.mxu0
    %v1670 = vadd.f32 0.0, %v1669
    %1671 = vmatmul.f32.gmra.mxu0 %v826
    %v1672 = vpop.f32.mrf.mxu0
    %v1673 = vadd.f32 0.0, %v1672
    %1674 = vmatmul.f32.gmra.mxu0 %v829
    %v1675 = vpop.f32.mrf.mxu0
    %v1676 = vadd.f32 0.0, %v1675
    %1677 = vmatmul.f32.gmra.mxu0 %v832
    %v1678 = vpop.f32.mrf.mxu0
    %v1679 = vadd.f32 0.0, %v1678
    %1680 = vmatmul.f32.gmra.mxu0 %v835
    %v1681 = vpop.f32.mrf.mxu0
    %v1682 = vadd.f32 0.0, %v1681
    %1683 = vmatmul.f32.gmra.mxu0 %v838
    %v1684 = vpop.f32.mrf.mxu0
    %v1685 = vadd.f32 0.0, %v1684
    %1686 = vmatmul.f32.gmra.mxu0 %v841
    %v1687 = vpop.f32.mrf.mxu0
    %v1688 = vadd.f32 0.0, %v1687
    %1689 = vmatmul.f32.gmra.mxu0 %v844
    %v1690 = vpop.f32.mrf.mxu0
    %v1691 = vadd.f32 0.0, %v1690
    %1692 = vmatmul.f32.gmra.mxu0 %v847
    %v1693 = vpop.f32.mrf.mxu0
    %v1694 = vadd.f32 0.0, %v1693
    %1695 = vmatmul.f32.gmra.mxu0 %v850
    %v1696 = vpop.f32.mrf.mxu0
    %v1697 = vadd.f32 0.0, %v1696
    %1698 = vmatmul.f32.gmra.mxu0 %v853
    %v1699 = vpop.f32.mrf.mxu0
    %v1700 = vadd.f32 0.0, %v1699
    %1701 = vmatmul.f32.gmra.mxu0 %v856
    %v1702 = vpop.f32.mrf.mxu0
    %v1703 = vadd.f32 0.0, %v1702
    %1704 = vmatmul.f32.gmra.mxu0 %v859
    %v1705 = vpop.f32.mrf.mxu0
    %v1706 = vadd.f32 0.0, %v1705
    %1707 = vmatmul.f32.gmra.mxu0 %v862
    %v1708 = vpop.f32.mrf.mxu0
    %v1709 = vadd.f32 0.0, %v1708
    %1710 = vdwg.mxu0
    %v1711 = vmax.f32 %v1664, 0.0
    %v1712 = vmax.f32 %v1667, 0.0
    %v1713 = vmax.f32 %v1670, 0.0
    %v1714 = vmax.f32 %v1673, 0.0
    %v1715 = vmax.f32 %v1676, 0.0
    %v1716 = vmax.f32 %v1679, 0.0
    %v1717 = vmax.f32 %v1682, 0.0
    %v1718 = vmax.f32 %v1685, 0.0
    %v1719 = vmax.f32 %v1688, 0.0
    %v1720 = vmax.f32 %v1691, 0.0
    %v1721 = vmax.f32 %v1694, 0.0
    %v1722 = vmax.f32 %v1697, 0.0
    %v1723 = vmax.f32 %v1700, 0.0
    %v1724 = vmax.f32 %v1703, 0.0
    %v1725 = vmax.f32 %v1706, 0.0
    %v1726 = vmax.f32 %v1709, 0.0
    %s1727 = scalar_lea.vmem [#allocation14], 128
    %v1728 = vld [vmem:[%s1727] sm:$0xff]
    %v1729 = vld [vmem:[%s1727 + $0x8] sm:$0xff]
    %v1730 = vld [vmem:[%s1727 + $0x10] sm:$0xff]
    %v1731 = vld [vmem:[%s1727 + $0x18] sm:$0xff]
    %v1732 = vld [vmem:[%s1727 + $0x20] sm:$0xff]
    %v1733 = vld [vmem:[%s1727 + $0x28] sm:$0xff]
    %v1734 = vld [vmem:[%s1727 + $0x30] sm:$0xff]
    %v1735 = vld [vmem:[%s1727 + $0x38] sm:$0xff]
    %v1736 = vld [vmem:[%s1727 + $0x40] sm:$0xff]
    %v1737 = vld [vmem:[%s1727 + $0x48] sm:$0xff]
    %v1738 = vld [vmem:[%s1727 + $0x50] sm:$0xff]
    %v1739 = vld [vmem:[%s1727 + $0x58] sm:$0xff]
    %v1740 = vld [vmem:[%s1727 + $0x60] sm:$0xff]
    %v1741 = vld [vmem:[%s1727 + $0x68] sm:$0xff]
    %v1742 = vld [vmem:[%s1727 + $0x70] sm:$0xff]
    %v1743 = vld [vmem:[%s1727 + $0x78] sm:$0xff]
    %s1744 = scalar_lea.vmem %s14, 1
    %v1745 = vld [vmem:[%s1744] sm:$0x1]
    %v1747 = vperm.slane %v1745, 0
    %1749 = vmatpush.msra.mxu0 %v1743
    %1750 = vmatpush.msra.mxu0 %v1742
    %1751 = vmatpush.msra.mxu0 %v1741
    %1752 = vmatpush.msra.mxu0 %v1740
    %1753 = vmatpush.msra.mxu0 %v1739
    %1754 = vmatpush.msra.mxu0 %v1738
    %1755 = vmatpush.msra.mxu0 %v1737
    %1756 = vmatpush.msra.mxu0 %v1736
    %1757 = vmatpush.msra.mxu0 %v1735
    %1758 = vmatpush.msra.mxu0 %v1734
    %1759 = vmatpush.msra.mxu0 %v1733
    %1760 = vmatpush.msra.mxu0 %v1732
    %1761 = vmatpush.msra.mxu0 %v1731
    %1762 = vmatpush.msra.mxu0 %v1730
    %1763 = vmatpush.msra.mxu0 %v1729
    %1764 = vmatpush.msra.mxu0 %v1728
    %1765 = vmatmul.f32.gmra.mxu0 %v1211
    %v1766 = vpop.f32.mrf.mxu0
    %v1767 = vadd.f32 %v1747, %v1766
    %1768 = vmatmul.f32.gmra.mxu0 %v1212
    %v1769 = vpop.f32.mrf.mxu0
    %v1770 = vadd.f32 %v1747, %v1769
    %1771 = vmatmul.f32.gmra.mxu0 %v1213
    %v1772 = vpop.f32.mrf.mxu0
    %v1773 = vadd.f32 %v1747, %v1772
    %1774 = vmatmul.f32.gmra.mxu0 %v1214
    %v1775 = vpop.f32.mrf.mxu0
    %v1776 = vadd.f32 %v1747, %v1775
    %1777 = vmatmul.f32.gmra.mxu0 %v1215
    %v1778 = vpop.f32.mrf.mxu0
    %v1779 = vadd.f32 %v1747, %v1778
    %1780 = vmatmul.f32.gmra.mxu0 %v1216
    %v1781 = vpop.f32.mrf.mxu0
    %v1782 = vadd.f32 %v1747, %v1781
    %1783 = vmatmul.f32.gmra.mxu0 %v1217
    %v1784 = vpop.f32.mrf.mxu0
    %v1785 = vadd.f32 %v1747, %v1784
    %1786 = vmatmul.f32.gmra.mxu0 %v1218
    %v1787 = vpop.f32.mrf.mxu0
    %v1788 = vadd.f32 %v1747, %v1787
    %1789 = vmatmul.f32.gmra.mxu0 %v1219
    %v1790 = vpop.f32.mrf.mxu0
    %v1791 = vadd.f32 %v1747, %v1790
    %1792 = vmatmul.f32.gmra.mxu0 %v1220
    %v1793 = vpop.f32.mrf.mxu0
    %v1794 = vadd.f32 %v1747, %v1793
    %1795 = vmatmul.f32.gmra.mxu0 %v1221
    %v1796 = vpop.f32.mrf.mxu0
    %v1797 = vadd.f32 %v1747, %v1796
    %1798 = vmatmul.f32.gmra.mxu0 %v1222
    %v1799 = vpop.f32.mrf.mxu0
    %v1800 = vadd.f32 %v1747, %v1799
    %1801 = vmatmul.f32.gmra.mxu0 %v1223
    %v1802 = vpop.f32.mrf.mxu0
    %v1803 = vadd.f32 %v1747, %v1802
    %1804 = vmatmul.f32.gmra.mxu0 %v1224
    %v1805 = vpop.f32.mrf.mxu0
    %v1806 = vadd.f32 %v1747, %v1805
    %1807 = vmatmul.f32.gmra.mxu0 %v1225
    %v1808 = vpop.f32.mrf.mxu0
    %v1809 = vadd.f32 %v1747, %v1808
    %1810 = vmatmul.f32.gmra.mxu0 %v1226
    %v1811 = vpop.f32.mrf.mxu0
    %v1812 = vadd.f32 %v1747, %v1811
    %1813 = vdwg.mxu0
    %v1814 = vmax.f32 %v1767, 0.0
    %v1815 = vmax.f32 %v1770, 0.0
    %v1816 = vmax.f32 %v1773, 0.0
    %v1817 = vmax.f32 %v1776, 0.0
    %v1818 = vmax.f32 %v1779, 0.0
    %v1819 = vmax.f32 %v1782, 0.0
    %v1820 = vmax.f32 %v1785, 0.0
    %v1821 = vmax.f32 %v1788, 0.0
    %v1822 = vmax.f32 %v1791, 0.0
    %v1823 = vmax.f32 %v1794, 0.0
    %v1824 = vmax.f32 %v1797, 0.0
    %v1825 = vmax.f32 %v1800, 0.0
    %v1826 = vmax.f32 %v1803, 0.0
    %v1827 = vmax.f32 %v1806, 0.0
    %v1828 = vmax.f32 %v1809, 0.0
    %v1829 = vmax.f32 %v1812, 0.0
    %v1830 = vadd.f32 %v1711, %v1814
    %v1831 = vadd.f32 %v1712, %v1815
    %v1832 = vadd.f32 %v1713, %v1816
    %v1833 = vadd.f32 %v1714, %v1817
    %v1834 = vadd.f32 %v1715, %v1818
    %v1835 = vadd.f32 %v1716, %v1819
    %v1836 = vadd.f32 %v1717, %v1820
    %v1837 = vadd.f32 %v1718, %v1821
    %v1838 = vadd.f32 %v1719, %v1822
    %v1839 = vadd.f32 %v1720, %v1823
    %v1840 = vadd.f32 %v1721, %v1824
    %v1841 = vadd.f32 %v1722, %v1825
    %v1842 = vadd.f32 %v1723, %v1826
    %v1843 = vadd.f32 %v1724, %v1827
    %v1844 = vadd.f32 %v1725, %v1828
    %v1845 = vadd.f32 %v1726, %v1829
    %1846 = vst [vmem:[#allocation16] sm:$0xff] %v1830
    %1847 = vst [vmem:[#allocation16 + $0x8] sm:$0xff] %v1831
    %1848 = vst [vmem:[#allocation16 + $0x10] sm:$0xff] %v1832
    %1849 = vst [vmem:[#allocation16 + $0x18] sm:$0xff] %v1833
    %1850 = vst [vmem:[#allocation16 + $0x20] sm:$0xff] %v1834
    %1851 = vst [vmem:[#allocation16 + $0x28] sm:$0xff] %v1835
    %1852 = vst [vmem:[#allocation16 + $0x30] sm:$0xff] %v1836
    %1853 = vst [vmem:[#allocation16 + $0x38] sm:$0xff] %v1837
    %1854 = vst [vmem:[#allocation16 + $0x40] sm:$0xff] %v1838
    %1855 = vst [vmem:[#allocation16 + $0x48] sm:$0xff] %v1839
    %1856 = vst [vmem:[#allocation16 + $0x50] sm:$0xff] %v1840
    %1857 = vst [vmem:[#allocation16 + $0x58] sm:$0xff] %v1841
    %1858 = vst [vmem:[#allocation16 + $0x60] sm:$0xff] %v1842
    %1859 = vst [vmem:[#allocation16 + $0x68] sm:$0xff] %v1843
    %1860 = vst [vmem:[#allocation16 + $0x70] sm:$0xff] %v1844
    %1861 = vst [vmem:[#allocation16 + $0x78] sm:$0xff] %v1845
    // Predicated region
    $region94: #{tpu_custom_call.1} parent=1 // pred_check
      _
    $region95: #{tpu_custom_call.1} parent=1 // pred_check_branch
      %1863 = sbr.rel (0) target = $region97
    $region96: #{tpu_custom_call.1} parent=1 // pred_region
      %1865 = vsyncadd [#allocation4], 0
      %s1866 = sshll.u32 [#allocation16], 4
      %s1867 = int_to_ptr.vmem [resolvable:$true] %s1866
      %s1868 = sshll.u32 %s15, 4
      %s1869 = int_to_ptr.hbm [resolvable:$true] %s1868
      %1874 = dma.vmem_to_hbm [thread:$0]  %s1867, 2048, %s1869, [#allocation4], 128, 128, 8
    $region97: #{tpu_custom_call.1} parent=1 // pred_fallthru
      _
    // Predicated region
    $region98: #{tpu_custom_call.1} parent=1 // pred_check
      _
    $region99: #{tpu_custom_call.1} parent=1 // pred_check_branch
      %1876 = sbr.rel (0) target = $region101
    $region100: #{tpu_custom_call.1} parent=1 // pred_region
      %1878 = dma.done [#allocation4], 2048
    $region101: #{tpu_custom_call.1} parent=1 // pred_fallthru
      _
    %1879 = vsyncpa [#allocation3], 1
    %1880 = vsyncpa [#allocation6], 1
    %1881 = vsyncpa [#allocation9], 1
    %1882 = vsyncpa [#allocation12], 1
    %1883 = vsyncpa [#allocation15], 1
    %1884 = vsyncpa [#allocation4], 1

</llo_original>
